<compile_context>
chip_gen: v7x
topology: tpu7x:2x2x1
jax: 0.10.0
libtpu: 0.0.40
codegen_flags: <defaults>
</compile_context>

<pallas_src>
import jax
import jax.numpy as jnp
from jax.experimental import pallas as pl
from jax.experimental.pallas import tpu as pltpu

D_IN, D_HID, D_OUT = 1024, 512, 2      # Classifier default dims=(1024, 512, 2)
D_OUT_PAD = 128                        # lane-dense padded output width


def _round_up(x: int, m: int) -> int:
    return ((x + m - 1) // m) * m


def _mlp_kernel(x_ref, w1_ref, b1_ref, w2_ref, b2_ref, o_ref):
    """Fused 2-layer MLP on one batch tile.

    x_ref : (TB, D_IN)        bf16  VMEM (batch tile)
    w1_ref: (D_IN, D_HID)     bf16  VMEM (resident, constant index_map)
    b1_ref: (1, D_HID)        f32   VMEM
    w2_ref: (D_HID, D_OUT_PAD) f32  VMEM (zero-padded past column 2)
    b2_ref: (1, D_OUT_PAD)    f32   VMEM
    o_ref : (TB, D_OUT_PAD)   f32   VMEM (lane-dense store)
    """
    # Layer 1: bf16 x bf16 -> f32 accumulate on the MXU.
    h = jnp.dot(x_ref[...], w1_ref[...], preferred_element_type=jnp.float32)
    h = jnp.maximum(h + b1_ref[...], 0.0)            # bias + ReLU in f32 on VPU
    # Layer 2 (tiny: K=512, N=128): f32 is fine, keeps output accuracy.
    y = jnp.dot(h, w2_ref[...], preferred_element_type=jnp.float32) + b2_ref[...]
    o_ref[...] = y


def prepare_params(w1, b1, w2, b2):
    """One-time layout prep from PyTorch-convention params.

    w1: (D_HID, D_IN), b1: (D_HID,), w2: (D_OUT, D_HID), b2: (D_OUT,)
    Returns kernel-ready params: (in, out) layouts, bf16 layer-1 weights,
    layer-2 weights/bias zero-padded to 128 output lanes.
    """
    w1_io = jnp.transpose(w1).astype(jnp.bfloat16)                    # (D_IN, D_HID)
    b1_2d = b1.reshape(1, D_HID).astype(jnp.float32)
    w2_pad = jnp.zeros((D_HID, D_OUT_PAD), jnp.float32)
    w2_pad = w2_pad.at[:, :D_OUT].set(jnp.transpose(w2).astype(jnp.float32))
    b2_pad = jnp.zeros((1, D_OUT_PAD), jnp.float32)
    b2_pad = b2_pad.at[:, :D_OUT].set(b2.reshape(1, D_OUT).astype(jnp.float32))
    return w1_io, b1_2d, w2_pad, b2_pad


def _default_tb(B: int) -> int:
    # Big tiles fill the MXU and amortize the ~0.35us per-grid-step overhead;
    # cap at 512 rows so double-buffered tiles + resident weights stay a few MiB
    # of VMEM (safe on v7x's smaller VMEM).  Keep >=2 grid steps when B allows
    # so both v7x TensorCores get sharded work.
    if B >= 1024:
        return 512
    if B >= 32:
        return _round_up(-(-B // 2), 16)
    return _round_up(B, 16)


def classifier_forward(x, params, *, tb=None):
    """x: (B, D_IN) float32.  params: output of prepare_params()."""
    w1_io, b1_2d, w2_pad, b2_pad = params
    B = x.shape[0]
    if tb is None:
        tb = _default_tb(B)
    tb = max(16, _round_up(tb, 16))          # bf16 sublane packing alignment

    # Ragged batch: pad rows up to a multiple of the tile, slice off afterwards.
    Bp = _round_up(B, tb)
    x_bf16 = x.astype(jnp.bfloat16)          # halves x DMA bytes, bf16 MXU path
    if Bp != B:
        x_bf16 = jnp.pad(x_bf16, ((0, Bp - B), (0, 0)))

    grid = (Bp // tb,)
    out = pl.pallas_call(
        _mlp_kernel,
        out_shape=jax.ShapeDtypeStruct((Bp, D_OUT_PAD), jnp.float32),
        grid_spec=pltpu.PrefetchScalarGridSpec(
            num_scalar_prefetch=0,
            grid=grid,
            in_specs=[
                pl.BlockSpec((tb, D_IN), lambda i: (i, 0)),          # batch-tiled input
                pl.BlockSpec((D_IN, D_HID), lambda i: (0, 0)),       # resident weights
                pl.BlockSpec((1, D_HID), lambda i: (0, 0)),
                pl.BlockSpec((D_HID, D_OUT_PAD), lambda i: (0, 0)),
                pl.BlockSpec((1, D_OUT_PAD), lambda i: (0, 0)),
            ],
            out_specs=pl.BlockSpec((tb, D_OUT_PAD), lambda i: (i, 0)),
        ),
        compiler_params=pltpu.CompilerParams(
            dimension_semantics=("parallel",),
        ),
    )(x_bf16, w1_io, b1_2d, w2_pad, b2_pad)

    return out[:B, :D_OUT]


def init_params(key):
    """Deterministic init mimicking torch.nn.Linear defaults
    (U[-1/sqrt(fan_in), 1/sqrt(fan_in)]), in PyTorch layout."""
    k1, k2, k3, k4 = jax.random.split(key, 4)
    bound1 = 1.0 / (D_IN ** 0.5)
    bound2 = 1.0 / (D_HID ** 0.5)
    w1 = jax.random.uniform(k1, (D_HID, D_IN), jnp.float32, -bound1, bound1)
    b1 = jax.random.uniform(k2, (D_HID,), jnp.float32, -bound1, bound1)
    w2 = jax.random.uniform(k3, (D_OUT, D_HID), jnp.float32, -bound2, bound2)
    b2 = jax.random.uniform(k4, (D_OUT,), jnp.float32, -bound2, bound2)
    return w1, b1, w2, b2


# TODO(synk): training utilities (WeightedCrossEntropyLoss, fit/predict/softmax,
# StandardScaler) are outside the module's forward pass and are not implemented here.

if __name__ == "__main__":
    key = jax.random.PRNGKey(0)
    k_x, k_p = jax.random.split(key)

    B = 8
    x = jax.random.normal(k_x, (B, D_IN), jnp.float32)
    w1, b1, w2, b2 = init_params(k_p)

    params = prepare_params(w1, b1, w2, b2)     # one-time layout prep (hoisted)
    out = classifier_forward(x, params)
    out = jax.block_until_ready(out)

    # Reference in plain JAX f32 (same math as the PyTorch forward).  Tolerance
    # loosened because the dominant matmul now runs with bf16 inputs.
    ref = jnp.maximum(x @ w1.T + b1, 0.0) @ w2.T + b2
    assert out.shape == (B, D_OUT)
    assert jnp.allclose(out, ref, atol=2e-2, rtol=2e-2), "mismatch vs reference"

    print("KERNEL_OK")
</pallas_src>

<mosaic_0001>
module attributes {stable_mosaic.version = 11 : i64} {
  func.func @_mlp_kernel(%arg0: i32, %arg1: memref<16x1024xbf16, #tpu.memory_space<vmem>>, %arg2: memref<1024x512xbf16, #tpu.memory_space<vmem>>, %arg3: memref<1x512xf32, #tpu.memory_space<vmem>>, %arg4: memref<512x128xf32, #tpu.memory_space<vmem>>, %arg5: memref<1x128xf32, #tpu.memory_space<vmem>>, %arg6: memref<16x128xf32, #tpu.memory_space<vmem>>) attributes {dimension_semantics = [#tpu.dimension_semantics<parallel>], iteration_bounds = array<i64: 1>, scalar_prefetch = 0 : i64, scratch_operands = 0 : i64, tpu.core_type = #tpu.core_type<tc>, window_params = [{transform_indices = @transform_0, window_bounds = array<i64: 16, 1024>}, {pipeline_mode = #tpu.pipeline_mode<synchronous>, transform_indices = @transform_1, window_bounds = array<i64: 1024, 512>}, {pipeline_mode = #tpu.pipeline_mode<synchronous>, transform_indices = @transform_2, window_bounds = array<i64: 1, 512>}, {pipeline_mode = #tpu.pipeline_mode<synchronous>, transform_indices = @transform_3, window_bounds = array<i64: 512, 128>}, {pipeline_mode = #tpu.pipeline_mode<synchronous>, transform_indices = @transform_4, window_bounds = array<i64: 1, 128>}, {transform_indices = @transform_5, window_bounds = array<i64: 16, 128>}]} {
    %c0 = arith.constant 0 : index
    %c0_0 = arith.constant 0 : index
    %0 = vector.load %arg1[%c0, %c0_0] : memref<16x1024xbf16, #tpu.memory_space<vmem>>, vector<16x1024xbf16>
    %c0_1 = arith.constant 0 : index
    %c0_2 = arith.constant 0 : index
    %1 = vector.load %arg2[%c0_1, %c0_2] : memref<1024x512xbf16, #tpu.memory_space<vmem>>, vector<1024x512xbf16>
    %cst = arith.constant dense<0.000000e+00> : vector<16x512xf32>
    %2 = tpu.matmul %0, %1, %cst {dimension_numbers = #tpu.dot_dimension_numbers<[1], [0], [0], [1], [0, 0, 1, 1], [], []>} : vector<16x1024xbf16>, vector<1024x512xbf16>, vector<16x512xf32> -> vector<16x512xf32>
    %c0_3 = arith.constant 0 : index
    %c0_4 = arith.constant 0 : index
    %3 = vector.load %arg3[%c0_3, %c0_4] : memref<1x512xf32, #tpu.memory_space<vmem>>, vector<1x512xf32>
    %4 = vector.broadcast %3 : vector<1x512xf32> to vector<16x512xf32>
    %5 = arith.addf %2, %4 : vector<16x512xf32>
    %cst_5 = arith.constant 0.000000e+00 : f32
    %6 = vector.broadcast %cst_5 : f32 to vector<16x512xf32>
    %7 = arith.maximumf %5, %6 : vector<16x512xf32>
    %c0_6 = arith.constant 0 : index
    %c0_7 = arith.constant 0 : index
    %8 = vector.load %arg4[%c0_6, %c0_7] : memref<512x128xf32, #tpu.memory_space<vmem>>, vector<512x128xf32>
    %cst_8 = arith.constant dense<0.000000e+00> : vector<16x128xf32>
    %9 = tpu.matmul %7, %8, %cst_8 {dimension_numbers = #tpu.dot_dimension_numbers<[1], [0], [0], [1], [0, 0, 1, 1], [], []>} : vector<16x512xf32>, vector<512x128xf32>, vector<16x128xf32> -> vector<16x128xf32>
    %c0_9 = arith.constant 0 : index
    %c0_10 = arith.constant 0 : index
    %10 = vector.load %arg5[%c0_9, %c0_10] : memref<1x128xf32, #tpu.memory_space<vmem>>, vector<1x128xf32>
    %11 = vector.broadcast %10 : vector<1x128xf32> to vector<16x128xf32>
    %12 = arith.addf %9, %11 : vector<16x128xf32>
    %c0_11 = arith.constant 0 : index
    %c0_12 = arith.constant 0 : index
    %13 = vector.load %arg6[%c0_11, %c0_12] : memref<16x128xf32, #tpu.memory_space<vmem>>, vector<16x128xf32>
    tpu.vector_store %arg6[%c0_11, %c0_12], %12 {strides = array<i32>} : memref<16x128xf32, #tpu.memory_space<vmem>>, vector<16x128xf32>,
    return
  }
  func.func @transform_0(%arg0: i32) -> (i32, i32) {
    %c0_i32 = arith.constant 0 : i32
    %c0_i32_0 = arith.constant 0 : i32
    return %arg0, %c0_i32 : i32, i32
  }
  func.func @transform_1(%arg0: i32) -> (i32, i32) {
    %c0_i32 = arith.constant 0 : i32
    %c0_i32_0 = arith.constant 0 : i32
    %c0_i32_1 = arith.constant 0 : i32
    return %c0_i32, %c0_i32_0 : i32, i32
  }
  func.func @transform_2(%arg0: i32) -> (i32, i32) {
    %c0_i32 = arith.constant 0 : i32
    %c0_i32_0 = arith.constant 0 : i32
    %c0_i32_1 = arith.constant 0 : i32
    return %c0_i32, %c0_i32_0 : i32, i32
  }
  func.func @transform_3(%arg0: i32) -> (i32, i32) {
    %c0_i32 = arith.constant 0 : i32
    %c0_i32_0 = arith.constant 0 : i32
    %c0_i32_1 = arith.constant 0 : i32
    return %c0_i32, %c0_i32_0 : i32, i32
  }
  func.func @transform_4(%arg0: i32) -> (i32, i32) {
    %c0_i32 = arith.constant 0 : i32
    %c0_i32_0 = arith.constant 0 : i32
    %c0_i32_1 = arith.constant 0 : i32
    return %c0_i32, %c0_i32_0 : i32, i32
  }
  func.func @transform_5(%arg0: i32) -> (i32, i32) {
    %c0_i32 = arith.constant 0 : i32
    %c0_i32_0 = arith.constant 0 : i32
    return %arg0, %c0_i32 : i32, i32
  }
}

</mosaic_0001>

<llo_original>
// kernel: tpu_custom_call.1
$region0: #{tpu_custom_call.1}
  #allocation0 [shape = 'u32[]', space=smem, size = 0x4, offset = 0x4, fixed_abs, tag = 'smem constant byte address 0x4 - core index']
  #allocation1 [shape = 'u32[144,128]{1,0:T(1,128)}', space=vmem, size = 0x12000, scoped, tag = 'internal scratch']
  %s0 = inlined_call_operand.hbm [shape: bf16[16,1024], index: 0, kind: input, shape index: {}]
  %s1 = inlined_call_operand.hbm [shape: bf16[1024,512], index: 1, kind: input, shape index: {}]
  %s2 = inlined_call_operand.vmem [shape: f32[1,512], index: 2, kind: input, shape index: {}]
  %s3 = inlined_call_operand.hbm [shape: f32[512,128], index: 3, kind: input, shape index: {}]
  %s4 = inlined_call_operand.vmem [shape: f32[1,128], index: 4, kind: input, shape index: {}]
  %s5 = inlined_call_operand.hbm [shape: f32[16,128], index: 5, kind: output, shape index: {}]
  %s6 = sld [smem:[#allocation0]]
  $region42: #{tpu_custom_call.1} parent=0
    _
  %s8 = ssub.s32 1, %s6
  %s9 = scalar_select 0, %s8, %s6
  $region1: #{tpu_custom_call.1} parent=0
    #allocation2 [shape = 'u8[32768]{0}', space=vmem, size = 0x8000, scoped, tag = 'input window, operand 0, single buffered']
    #allocation3 [shape = 's32[1]{0}', space=sflag, size = 0x4, scoped, tag = 'scoped memory for tpu_custom_call.1']
    #allocation4 [shape = 's32[1]{0}', space=sflag, size = 0x4, scoped, tag = 'scoped memory for tpu_custom_call.1']
    #allocation5 [shape = 'u8[1048576]{0}', space=vmem, size = 0x100000, scoped, tag = 'input window, operand 1, single buffered']
    #allocation6 [shape = 's32[1]{0}', space=sflag, size = 0x4, scoped, tag = 'scoped memory for tpu_custom_call.1']
    #allocation7 [shape = 'u8[262144]{0}', space=vmem, size = 0x40000, scoped, tag = 'input window, operand 3, single buffered']
    #allocation8 [shape = 'u8[8192]{0}', space=vmem, size = 0x2000, scoped, tag = 'output window, operand 0, single buffered']
    %10 = vsyncpa [#allocation3], 0
    %11 = vsyncpa [#allocation6], 0
    %12 = vsyncpa [#allocation4], 0
    // Predicated region
    $region2: #{tpu_custom_call.1} parent=1 // pred_check
      _
    $region3: #{tpu_custom_call.1} parent=1 // pred_check_branch
      %14 = sbr.rel (0) target = $region5
    $region4: #{tpu_custom_call.1} parent=1 // pred_region
      %s16 = ssub.s32 1024, 1024
      %17 = vsyncadd [#allocation3], %s16
      %s18 = sshll.u32 [#allocation2], 4
      %s19 = int_to_ptr.vmem [resolvable:$true] %s18
      %24 = dma.hbm_to_vmem [thread:$0]  %s0, 1024, %s19, [#allocation3], 512, 512, 32
    $region5: #{tpu_custom_call.1} parent=1 // pred_fallthru
      _
    // Predicated region
    $region6: #{tpu_custom_call.1} parent=1 // pred_check
      _
    $region7: #{tpu_custom_call.1} parent=1 // pred_check_branch
      %26 = sbr.rel (0) target = $region9
    $region8: #{tpu_custom_call.1} parent=1 // pred_region
      %s28 = ssub.s32 32768, 32768
      %29 = vsyncadd [#allocation6], %s28
      %s30 = sshll.u32 [#allocation5], 4
      %s31 = int_to_ptr.vmem [resolvable:$true] %s30
      %36 = dma.hbm_to_vmem [thread:$0]  %s1, 32768, %s31, [#allocation6], 256, 256, 16
    $region9: #{tpu_custom_call.1} parent=1 // pred_fallthru
      _
    // Predicated region
    $region10: #{tpu_custom_call.1} parent=1 // pred_check
      _
    $region11: #{tpu_custom_call.1} parent=1 // pred_check_branch
      %38 = sbr.rel (0) target = $region13
    $region12: #{tpu_custom_call.1} parent=1 // pred_region
      _
    $region13: #{tpu_custom_call.1} parent=1 // pred_fallthru
      _
    // Predicated region
    $region14: #{tpu_custom_call.1} parent=1 // pred_check
      _
    $region15: #{tpu_custom_call.1} parent=1 // pred_check_branch
      %40 = sbr.rel (0) target = $region17
    $region16: #{tpu_custom_call.1} parent=1 // pred_region
      %s42 = ssub.s32 8192, 8192
      %43 = vsyncadd [#allocation6], %s42
      %s44 = sshll.u32 [#allocation7], 4
      %s45 = int_to_ptr.vmem [resolvable:$true] %s44
      %50 = dma.hbm_to_vmem [thread:$0]  %s3, 8192, %s45, [#allocation6], 128, 128, 8
    $region17: #{tpu_custom_call.1} parent=1 // pred_fallthru
      _
    // Predicated region
    $region18: #{tpu_custom_call.1} parent=1 // pred_check
      _
    $region19: #{tpu_custom_call.1} parent=1 // pred_check_branch
      %52 = sbr.rel (0) target = $region21
    $region20: #{tpu_custom_call.1} parent=1 // pred_region
      _
    $region21: #{tpu_custom_call.1} parent=1 // pred_fallthru
      _
    // Predicated region
    $region22: #{tpu_custom_call.1} parent=1 // pred_check
      _
    $region23: #{tpu_custom_call.1} parent=1 // pred_check_branch
      %54 = sbr.rel (0) target = $region25
    $region24: #{tpu_custom_call.1} parent=1 // pred_region
      %55 = dma.done [#allocation3], 1024
    $region25: #{tpu_custom_call.1} parent=1 // pred_fallthru
      _
    // Predicated region
    $region26: #{tpu_custom_call.1} parent=1 // pred_check
      _
    $region27: #{tpu_custom_call.1} parent=1 // pred_check_branch
      %57 = sbr.rel (0) target = $region29
    $region28: #{tpu_custom_call.1} parent=1 // pred_region
      %58 = dma.done [#allocation6], 32768
    $region29: #{tpu_custom_call.1} parent=1 // pred_fallthru
      _
    // Predicated region
    $region30: #{tpu_custom_call.1} parent=1 // pred_check
      _
    $region31: #{tpu_custom_call.1} parent=1 // pred_check_branch
      %60 = sbr.rel (0) target = $region33
    $region32: #{tpu_custom_call.1} parent=1 // pred_region
      %61 = dma.done [#allocation6], 8192
    $region33: #{tpu_custom_call.1} parent=1 // pred_fallthru
      _
    %v62 = vld [vmem:[#allocation2] sm:$0xff]
    %v63 = vld [vmem:[#allocation2 + $0x8] sm:$0xff]
    %v64 = vld [vmem:[#allocation2 + $0x10] sm:$0xff]
    %v65 = vld [vmem:[#allocation2 + $0x18] sm:$0xff]
    %v66 = vld [vmem:[#allocation2 + $0x20] sm:$0xff]
    %v67 = vld [vmem:[#allocation2 + $0x28] sm:$0xff]
    %v68 = vld [vmem:[#allocation2 + $0x30] sm:$0xff]
    %v69 = vld [vmem:[#allocation2 + $0x38] sm:$0xff]
    %v70 = vld [vmem:[#allocation5] sm:$0xff]
    %v71 = vld [vmem:[#allocation5 + $0x8] sm:$0xff]
    %v72 = vld [vmem:[#allocation5 + $0x10] sm:$0xff]
    %v73 = vld [vmem:[#allocation5 + $0x18] sm:$0xff]
    %v74 = vld [vmem:[#allocation5 + $0x20] sm:$0xff]
    %v75 = vld [vmem:[#allocation5 + $0x28] sm:$0xff]
    %v76 = vld [vmem:[#allocation5 + $0x30] sm:$0xff]
    %v77 = vld [vmem:[#allocation5 + $0x38] sm:$0xff]
    %v78 = vld [vmem:[#allocation5 + $0x40] sm:$0xff]
    %v79 = vld [vmem:[#allocation5 + $0x48] sm:$0xff]
    %v80 = vld [vmem:[#allocation5 + $0x50] sm:$0xff]
    %v81 = vld [vmem:[#allocation5 + $0x58] sm:$0xff]
    %v82 = vld [vmem:[#allocation5 + $0x60] sm:$0xff]
    %v83 = vld [vmem:[#allocation5 + $0x68] sm:$0xff]
    %v84 = vld [vmem:[#allocation5 + $0x70] sm:$0xff]
    %v85 = vld [vmem:[#allocation5 + $0x78] sm:$0xff]
    %v86 = vld [vmem:[#allocation5 + $0x80] sm:$0xff]
    %v87 = vld [vmem:[#allocation5 + $0x88] sm:$0xff]
    %v88 = vld [vmem:[#allocation5 + $0x90] sm:$0xff]
    %v89 = vld [vmem:[#allocation5 + $0x98] sm:$0xff]
    %v90 = vld [vmem:[#allocation5 + $0xa0] sm:$0xff]
    %v91 = vld [vmem:[#allocation5 + $0xa8] sm:$0xff]
    %v92 = vld [vmem:[#allocation5 + $0xb0] sm:$0xff]
    %v93 = vld [vmem:[#allocation5 + $0xb8] sm:$0xff]
    %v94 = vld [vmem:[#allocation5 + $0xc0] sm:$0xff]
    %v95 = vld [vmem:[#allocation5 + $0xc8] sm:$0xff]
    %v96 = vld [vmem:[#allocation5 + $0xd0] sm:$0xff]
    %v97 = vld [vmem:[#allocation5 + $0xd8] sm:$0xff]
    %v98 = vld [vmem:[#allocation5 + $0xe0] sm:$0xff]
    %v99 = vld [vmem:[#allocation5 + $0xe8] sm:$0xff]
    %v100 = vld [vmem:[#allocation5 + $0xf0] sm:$0xff]
    %v101 = vld [vmem:[#allocation5 + $0xf8] sm:$0xff]
    %v102 = vld [vmem:[#allocation5 + $0x100] sm:$0xff]
    %v103 = vld [vmem:[#allocation5 + $0x108] sm:$0xff]
    %v104 = vld [vmem:[#allocation5 + $0x110] sm:$0xff]
    %v105 = vld [vmem:[#allocation5 + $0x118] sm:$0xff]
    %v106 = vld [vmem:[#allocation5 + $0x120] sm:$0xff]
    %v107 = vld [vmem:[#allocation5 + $0x128] sm:$0xff]
    %v108 = vld [vmem:[#allocation5 + $0x130] sm:$0xff]
    %v109 = vld [vmem:[#allocation5 + $0x138] sm:$0xff]
    %v110 = vld [vmem:[#allocation5 + $0x140] sm:$0xff]
    %v111 = vld [vmem:[#allocation5 + $0x148] sm:$0xff]
    %v112 = vld [vmem:[#allocation5 + $0x150] sm:$0xff]
    %v113 = vld [vmem:[#allocation5 + $0x158] sm:$0xff]
    %v114 = vld [vmem:[#allocation5 + $0x160] sm:$0xff]
    %v115 = vld [vmem:[#allocation5 + $0x168] sm:$0xff]
    %v116 = vld [vmem:[#allocation5 + $0x170] sm:$0xff]
    %v117 = vld [vmem:[#allocation5 + $0x178] sm:$0xff]
    %v118 = vld [vmem:[#allocation5 + $0x180] sm:$0xff]
    %v119 = vld [vmem:[#allocation5 + $0x188] sm:$0xff]
    %v120 = vld [vmem:[#allocation5 + $0x190] sm:$0xff]
    %v121 = vld [vmem:[#allocation5 + $0x198] sm:$0xff]
    %v122 = vld [vmem:[#allocation5 + $0x1a0] sm:$0xff]
    %v123 = vld [vmem:[#allocation5 + $0x1a8] sm:$0xff]
    %v124 = vld [vmem:[#allocation5 + $0x1b0] sm:$0xff]
    %v125 = vld [vmem:[#allocation5 + $0x1b8] sm:$0xff]
    %v126 = vld [vmem:[#allocation5 + $0x1c0] sm:$0xff]
    %v127 = vld [vmem:[#allocation5 + $0x1c8] sm:$0xff]
    %v128 = vld [vmem:[#allocation5 + $0x1d0] sm:$0xff]
    %v129 = vld [vmem:[#allocation5 + $0x1d8] sm:$0xff]
    %v130 = vld [vmem:[#allocation5 + $0x1e0] sm:$0xff]
    %v131 = vld [vmem:[#allocation5 + $0x1e8] sm:$0xff]
    %v132 = vld [vmem:[#allocation5 + $0x1f0] sm:$0xff]
    %v133 = vld [vmem:[#allocation5 + $0x1f8] sm:$0xff]
    %v134 = vld [vmem:[#allocation5 + $0x200] sm:$0xff]
    %v135 = vld [vmem:[#allocation5 + $0x208] sm:$0xff]
    %v136 = vld [vmem:[#allocation5 + $0x210] sm:$0xff]
    %v137 = vld [vmem:[#allocation5 + $0x218] sm:$0xff]
    %v138 = vld [vmem:[#allocation5 + $0x220] sm:$0xff]
    %v139 = vld [vmem:[#allocation5 + $0x228] sm:$0xff]
    %v140 = vld [vmem:[#allocation5 + $0x230] sm:$0xff]
    %v141 = vld [vmem:[#allocation5 + $0x238] sm:$0xff]
    %v142 = vld [vmem:[#allocation5 + $0x240] sm:$0xff]
    %v143 = vld [vmem:[#allocation5 + $0x248] sm:$0xff]
    %v144 = vld [vmem:[#allocation5 + $0x250] sm:$0xff]
    %v145 = vld [vmem:[#allocation5 + $0x258] sm:$0xff]
    %v146 = vld [vmem:[#allocation5 + $0x260] sm:$0xff]
    %v147 = vld [vmem:[#allocation5 + $0x268] sm:$0xff]
    %v148 = vld [vmem:[#allocation5 + $0x270] sm:$0xff]
    %v149 = vld [vmem:[#allocation5 + $0x278] sm:$0xff]
    %v150 = vld [vmem:[#allocation5 + $0x280] sm:$0xff]
    %v151 = vld [vmem:[#allocation5 + $0x288] sm:$0xff]
    %v152 = vld [vmem:[#allocation5 + $0x290] sm:$0xff]
    %v153 = vld [vmem:[#allocation5 + $0x298] sm:$0xff]
    %v154 = vld [vmem:[#allocation5 + $0x2a0] sm:$0xff]
    %v155 = vld [vmem:[#allocation5 + $0x2a8] sm:$0xff]
    %v156 = vld [vmem:[#allocation5 + $0x2b0] sm:$0xff]
    %v157 = vld [vmem:[#allocation5 + $0x2b8] sm:$0xff]
    %v158 = vld [vmem:[#allocation5 + $0x2c0] sm:$0xff]
    %v159 = vld [vmem:[#allocation5 + $0x2c8] sm:$0xff]
    %v160 = vld [vmem:[#allocation5 + $0x2d0] sm:$0xff]
    %v161 = vld [vmem:[#allocation5 + $0x2d8] sm:$0xff]
    %v162 = vld [vmem:[#allocation5 + $0x2e0] sm:$0xff]
    %v163 = vld [vmem:[#allocation5 + $0x2e8] sm:$0xff]
    %v164 = vld [vmem:[#allocation5 + $0x2f0] sm:$0xff]
    %v165 = vld [vmem:[#allocation5 + $0x2f8] sm:$0xff]
    %v166 = vld [vmem:[#allocation5 + $0x300] sm:$0xff]
    %v167 = vld [vmem:[#allocation5 + $0x308] sm:$0xff]
    %v168 = vld [vmem:[#allocation5 + $0x310] sm:$0xff]
    %v169 = vld [vmem:[#allocation5 + $0x318] sm:$0xff]
    %v170 = vld [vmem:[#allocation5 + $0x320] sm:$0xff]
    %v171 = vld [vmem:[#allocation5 + $0x328] sm:$0xff]
    %v172 = vld [vmem:[#allocation5 + $0x330] sm:$0xff]
    %v173 = vld [vmem:[#allocation5 + $0x338] sm:$0xff]
    %v174 = vld [vmem:[#allocation5 + $0x340] sm:$0xff]
    %v175 = vld [vmem:[#allocation5 + $0x348] sm:$0xff]
    %v176 = vld [vmem:[#allocation5 + $0x350] sm:$0xff]
    %v177 = vld [vmem:[#allocation5 + $0x358] sm:$0xff]
    %v178 = vld [vmem:[#allocation5 + $0x360] sm:$0xff]
    %v179 = vld [vmem:[#allocation5 + $0x368] sm:$0xff]
    %v180 = vld [vmem:[#allocation5 + $0x370] sm:$0xff]
    %v181 = vld [vmem:[#allocation5 + $0x378] sm:$0xff]
    %v182 = vld [vmem:[#allocation5 + $0x380] sm:$0xff]
    %v183 = vld [vmem:[#allocation5 + $0x388] sm:$0xff]
    %v184 = vld [vmem:[#allocation5 + $0x390] sm:$0xff]
    %v185 = vld [vmem:[#allocation5 + $0x398] sm:$0xff]
    %v186 = vld [vmem:[#allocation5 + $0x3a0] sm:$0xff]
    %v187 = vld [vmem:[#allocation5 + $0x3a8] sm:$0xff]
    %v188 = vld [vmem:[#allocation5 + $0x3b0] sm:$0xff]
    %v189 = vld [vmem:[#allocation5 + $0x3b8] sm:$0xff]
    %v190 = vld [vmem:[#allocation5 + $0x3c0] sm:$0xff]
    %v191 = vld [vmem:[#allocation5 + $0x3c8] sm:$0xff]
    %v192 = vld [vmem:[#allocation5 + $0x3d0] sm:$0xff]
    %v193 = vld [vmem:[#allocation5 + $0x3d8] sm:$0xff]
    %v194 = vld [vmem:[#allocation5 + $0x3e0] sm:$0xff]
    %v195 = vld [vmem:[#allocation5 + $0x3e8] sm:$0xff]
    %v196 = vld [vmem:[#allocation5 + $0x3f0] sm:$0xff]
    %v197 = vld [vmem:[#allocation5 + $0x3f8] sm:$0xff]
    %v198 = vld [vmem:[#allocation5 + $0x400] sm:$0xff]
    %v199 = vld [vmem:[#allocation5 + $0x408] sm:$0xff]
    %v200 = vld [vmem:[#allocation5 + $0x410] sm:$0xff]
    %v201 = vld [vmem:[#allocation5 + $0x418] sm:$0xff]
    %v202 = vld [vmem:[#allocation5 + $0x420] sm:$0xff]
    %v203 = vld [vmem:[#allocation5 + $0x428] sm:$0xff]
    %v204 = vld [vmem:[#allocation5 + $0x430] sm:$0xff]
    %v205 = vld [vmem:[#allocation5 + $0x438] sm:$0xff]
    %v206 = vld [vmem:[#allocation5 + $0x440] sm:$0xff]
    %v207 = vld [vmem:[#allocation5 + $0x448] sm:$0xff]
    %v208 = vld [vmem:[#allocation5 + $0x450] sm:$0xff]
    %v209 = vld [vmem:[#allocation5 + $0x458] sm:$0xff]
    %v210 = vld [vmem:[#allocation5 + $0x460] sm:$0xff]
    %v211 = vld [vmem:[#allocation5 + $0x468] sm:$0xff]
    %v212 = vld [vmem:[#allocation5 + $0x470] sm:$0xff]
    %v213 = vld [vmem:[#allocation5 + $0x478] sm:$0xff]
    %v214 = vld [vmem:[#allocation5 + $0x480] sm:$0xff]
    %v215 = vld [vmem:[#allocation5 + $0x488] sm:$0xff]
    %v216 = vld [vmem:[#allocation5 + $0x490] sm:$0xff]
    %v217 = vld [vmem:[#allocation5 + $0x498] sm:$0xff]
    %v218 = vld [vmem:[#allocation5 + $0x4a0] sm:$0xff]
    %v219 = vld [vmem:[#allocation5 + $0x4a8] sm:$0xff]
    %v220 = vld [vmem:[#allocation5 + $0x4b0] sm:$0xff]
    %v221 = vld [vmem:[#allocation5 + $0x4b8] sm:$0xff]
    %v222 = vld [vmem:[#allocation5 + $0x4c0] sm:$0xff]
    %v223 = vld [vmem:[#allocation5 + $0x4c8] sm:$0xff]
    %v224 = vld [vmem:[#allocation5 + $0x4d0] sm:$0xff]
    %v225 = vld [vmem:[#allocation5 + $0x4d8] sm:$0xff]
    %v226 = vld [vmem:[#allocation5 + $0x4e0] sm:$0xff]
    %v227 = vld [vmem:[#allocation5 + $0x4e8] sm:$0xff]
    %v228 = vld [vmem:[#allocation5 + $0x4f0] sm:$0xff]
    %v229 = vld [vmem:[#allocation5 + $0x4f8] sm:$0xff]
    %v230 = vld [vmem:[#allocation5 + $0x500] sm:$0xff]
    %v231 = vld [vmem:[#allocation5 + $0x508] sm:$0xff]
    %v232 = vld [vmem:[#allocation5 + $0x510] sm:$0xff]
    %v233 = vld [vmem:[#allocation5 + $0x518] sm:$0xff]
    %v234 = vld [vmem:[#allocation5 + $0x520] sm:$0xff]
    %v235 = vld [vmem:[#allocation5 + $0x528] sm:$0xff]
    %v236 = vld [vmem:[#allocation5 + $0x530] sm:$0xff]
    %v237 = vld [vmem:[#allocation5 + $0x538] sm:$0xff]
    %v238 = vld [vmem:[#allocation5 + $0x540] sm:$0xff]
    %v239 = vld [vmem:[#allocation5 + $0x548] sm:$0xff]
    %v240 = vld [vmem:[#allocation5 + $0x550] sm:$0xff]
    %v241 = vld [vmem:[#allocation5 + $0x558] sm:$0xff]
    %v242 = vld [vmem:[#allocation5 + $0x560] sm:$0xff]
    %v243 = vld [vmem:[#allocation5 + $0x568] sm:$0xff]
    %v244 = vld [vmem:[#allocation5 + $0x570] sm:$0xff]
    %v245 = vld [vmem:[#allocation5 + $0x578] sm:$0xff]
    %v246 = vld [vmem:[#allocation5 + $0x580] sm:$0xff]
    %v247 = vld [vmem:[#allocation5 + $0x588] sm:$0xff]
    %v248 = vld [vmem:[#allocation5 + $0x590] sm:$0xff]
    %v249 = vld [vmem:[#allocation5 + $0x598] sm:$0xff]
    %v250 = vld [vmem:[#allocation5 + $0x5a0] sm:$0xff]
    %v251 = vld [vmem:[#allocation5 + $0x5a8] sm:$0xff]
    %v252 = vld [vmem:[#allocation5 + $0x5b0] sm:$0xff]
    %v253 = vld [vmem:[#allocation5 + $0x5b8] sm:$0xff]
    %v254 = vld [vmem:[#allocation5 + $0x5c0] sm:$0xff]
    %v255 = vld [vmem:[#allocation5 + $0x5c8] sm:$0xff]
    %v256 = vld [vmem:[#allocation5 + $0x5d0] sm:$0xff]
    %v257 = vld [vmem:[#allocation5 + $0x5d8] sm:$0xff]
    %v258 = vld [vmem:[#allocation5 + $0x5e0] sm:$0xff]
    %v259 = vld [vmem:[#allocation5 + $0x5e8] sm:$0xff]
    %v260 = vld [vmem:[#allocation5 + $0x5f0] sm:$0xff]
    %v261 = vld [vmem:[#allocation5 + $0x5f8] sm:$0xff]
    %v262 = vld [vmem:[#allocation5 + $0x600] sm:$0xff]
    %v263 = vld [vmem:[#allocation5 + $0x608] sm:$0xff]
    %v264 = vld [vmem:[#allocation5 + $0x610] sm:$0xff]
    %v265 = vld [vmem:[#allocation5 + $0x618] sm:$0xff]
    %v266 = vld [vmem:[#allocation5 + $0x620] sm:$0xff]
    %v267 = vld [vmem:[#allocation5 + $0x628] sm:$0xff]
    %v268 = vld [vmem:[#allocation5 + $0x630] sm:$0xff]
    %v269 = vld [vmem:[#allocation5 + $0x638] sm:$0xff]
    %v270 = vld [vmem:[#allocation5 + $0x640] sm:$0xff]
    %v271 = vld [vmem:[#allocation5 + $0x648] sm:$0xff]
    %v272 = vld [vmem:[#allocation5 + $0x650] sm:$0xff]
    %v273 = vld [vmem:[#allocation5 + $0x658] sm:$0xff]
    %v274 = vld [vmem:[#allocation5 + $0x660] sm:$0xff]
    %v275 = vld [vmem:[#allocation5 + $0x668] sm:$0xff]
    %v276 = vld [vmem:[#allocation5 + $0x670] sm:$0xff]
    %v277 = vld [vmem:[#allocation5 + $0x678] sm:$0xff]
    %v278 = vld [vmem:[#allocation5 + $0x680] sm:$0xff]
    %v279 = vld [vmem:[#allocation5 + $0x688] sm:$0xff]
    %v280 = vld [vmem:[#allocation5 + $0x690] sm:$0xff]
    %v281 = vld [vmem:[#allocation5 + $0x698] sm:$0xff]
    %v282 = vld [vmem:[#allocation5 + $0x6a0] sm:$0xff]
    %v283 = vld [vmem:[#allocation5 + $0x6a8] sm:$0xff]
    %v284 = vld [vmem:[#allocation5 + $0x6b0] sm:$0xff]
    %v285 = vld [vmem:[#allocation5 + $0x6b8] sm:$0xff]
    %v286 = vld [vmem:[#allocation5 + $0x6c0] sm:$0xff]
    %v287 = vld [vmem:[#allocation5 + $0x6c8] sm:$0xff]
    %v288 = vld [vmem:[#allocation5 + $0x6d0] sm:$0xff]
    %v289 = vld [vmem:[#allocation5 + $0x6d8] sm:$0xff]
    %v290 = vld [vmem:[#allocation5 + $0x6e0] sm:$0xff]
    %v291 = vld [vmem:[#allocation5 + $0x6e8] sm:$0xff]
    %v292 = vld [vmem:[#allocation5 + $0x6f0] sm:$0xff]
    %v293 = vld [vmem:[#allocation5 + $0x6f8] sm:$0xff]
    %v294 = vld [vmem:[#allocation5 + $0x700] sm:$0xff]
    %v295 = vld [vmem:[#allocation5 + $0x708] sm:$0xff]
    %v296 = vld [vmem:[#allocation5 + $0x710] sm:$0xff]
    %v297 = vld [vmem:[#allocation5 + $0x718] sm:$0xff]
    %v298 = vld [vmem:[#allocation5 + $0x720] sm:$0xff]
    %v299 = vld [vmem:[#allocation5 + $0x728] sm:$0xff]
    %v300 = vld [vmem:[#allocation5 + $0x730] sm:$0xff]
    %v301 = vld [vmem:[#allocation5 + $0x738] sm:$0xff]
    %v302 = vld [vmem:[#allocation5 + $0x740] sm:$0xff]
    %v303 = vld [vmem:[#allocation5 + $0x748] sm:$0xff]
    %v304 = vld [vmem:[#allocation5 + $0x750] sm:$0xff]
    %v305 = vld [vmem:[#allocation5 + $0x758] sm:$0xff]
    %v306 = vld [vmem:[#allocation5 + $0x760] sm:$0xff]
    %v307 = vld [vmem:[#allocation5 + $0x768] sm:$0xff]
    %v308 = vld [vmem:[#allocation5 + $0x770] sm:$0xff]
    %v309 = vld [vmem:[#allocation5 + $0x778] sm:$0xff]
    %v310 = vld [vmem:[#allocation5 + $0x780] sm:$0xff]
    %v311 = vld [vmem:[#allocation5 + $0x788] sm:$0xff]
    %v312 = vld [vmem:[#allocation5 + $0x790] sm:$0xff]
    %v313 = vld [vmem:[#allocation5 + $0x798] sm:$0xff]
    %v314 = vld [vmem:[#allocation5 + $0x7a0] sm:$0xff]
    %v315 = vld [vmem:[#allocation5 + $0x7a8] sm:$0xff]
    %v316 = vld [vmem:[#allocation5 + $0x7b0] sm:$0xff]
    %v317 = vld [vmem:[#allocation5 + $0x7b8] sm:$0xff]
    %v318 = vld [vmem:[#allocation5 + $0x7c0] sm:$0xff]
    %v319 = vld [vmem:[#allocation5 + $0x7c8] sm:$0xff]
    %v320 = vld [vmem:[#allocation5 + $0x7d0] sm:$0xff]
    %v321 = vld [vmem:[#allocation5 + $0x7d8] sm:$0xff]
    %v322 = vld [vmem:[#allocation5 + $0x7e0] sm:$0xff]
    %v323 = vld [vmem:[#allocation5 + $0x7e8] sm:$0xff]
    %v324 = vld [vmem:[#allocation5 + $0x7f0] sm:$0xff]
    %v325 = vld [vmem:[#allocation5 + $0x7f8] sm:$0xff]
    %v326 = vld [vmem:[%s2] sm:$0xf]
    %v328 = vlaneseq
    %v329 = vshrl.u32 %v328, 7
    %v330 = vsub.s32 0, %v329
    %v331 = vrot.slane %v326, %v330
    %v332 = vlaneseq
    %v333 = vshrl.u32 %v332, 7
    %v334 = vsub.s32 1, %v333
    %v335 = vrot.slane %v326, %v334
    %v336 = vlaneseq
    %v337 = vshrl.u32 %v336, 7
    %v338 = vsub.s32 2, %v337
    %v339 = vrot.slane %v326, %v338
    %v340 = vlaneseq
    %v341 = vshrl.u32 %v340, 7
    %v342 = vsub.s32 3, %v341
    %v343 = vrot.slane %v326, %v342
    %v356 = vunpack.c.l.b16 %v62
    %v357 = vunpack.c.h.b16 %v62
    %v358 = vunpack.c.l.b16 %v63
    %v359 = vunpack.c.h.b16 %v63
    %v360 = vunpack.c.l.b16 %v64
    %v361 = vunpack.c.h.b16 %v64
    %v362 = vunpack.c.l.b16 %v65
    %v363 = vunpack.c.h.b16 %v65
    %v364 = vunpack.c.l.b16 %v66
    %v365 = vunpack.c.h.b16 %v66
    %v366 = vunpack.c.l.b16 %v67
    %v367 = vunpack.c.h.b16 %v67
    %v368 = vunpack.c.l.b16 %v68
    %v369 = vunpack.c.h.b16 %v68
    %v370 = vunpack.c.l.b16 %v69
    %v371 = vunpack.c.h.b16 %v69
    %v372 = vpack.c.b16 %v364, %v356
    %v373 = vpack.c.b16 %v365, %v357
    %v374 = vpack.c.b16 %v366, %v358
    %v375 = vpack.c.b16 %v367, %v359
    %v376 = vpack.c.b16 %v368, %v360
    %v377 = vpack.c.b16 %v369, %v361
    %v378 = vpack.c.b16 %v370, %v362
    %v379 = vpack.c.b16 %v371, %v363
    %v644 = vunpack.c.l.b16 %v70
    %v645 = vunpack.c.h.b16 %v70
    %v646 = vunpack.c.l.b16 %v71
    %v647 = vunpack.c.h.b16 %v71
    %v648 = vunpack.c.l.b16 %v72
    %v649 = vunpack.c.h.b16 %v72
    %v650 = vunpack.c.l.b16 %v73
    %v651 = vunpack.c.h.b16 %v73
    %v652 = vunpack.c.l.b16 %v74
    %v653 = vunpack.c.h.b16 %v74
    %v654 = vunpack.c.l.b16 %v75
    %v655 = vunpack.c.h.b16 %v75
    %v656 = vunpack.c.l.b16 %v76
    %v657 = vunpack.c.h.b16 %v76
    %v658 = vunpack.c.l.b16 %v77
    %v659 = vunpack.c.h.b16 %v77
    %v660 = vunpack.c.l.b16 %v78
    %v661 = vunpack.c.h.b16 %v78
    %v662 = vunpack.c.l.b16 %v79
    %v663 = vunpack.c.h.b16 %v79
    %v664 = vunpack.c.l.b16 %v80
    %v665 = vunpack.c.h.b16 %v80
    %v666 = vunpack.c.l.b16 %v81
    %v667 = vunpack.c.h.b16 %v81
    %v668 = vunpack.c.l.b16 %v82
    %v669 = vunpack.c.h.b16 %v82
    %v670 = vunpack.c.l.b16 %v83
    %v671 = vunpack.c.h.b16 %v83
    %v672 = vunpack.c.l.b16 %v84
    %v673 = vunpack.c.h.b16 %v84
    %v674 = vunpack.c.l.b16 %v85
    %v675 = vunpack.c.h.b16 %v85
    %v676 = vunpack.c.l.b16 %v86
    %v677 = vunpack.c.h.b16 %v86
    %v678 = vunpack.c.l.b16 %v87
    %v679 = vunpack.c.h.b16 %v87
    %v680 = vunpack.c.l.b16 %v88
    %v681 = vunpack.c.h.b16 %v88
    %v682 = vunpack.c.l.b16 %v89
    %v683 = vunpack.c.h.b16 %v89
    %v684 = vunpack.c.l.b16 %v90
    %v685 = vunpack.c.h.b16 %v90
    %v686 = vunpack.c.l.b16 %v91
    %v687 = vunpack.c.h.b16 %v91
    %v688 = vunpack.c.l.b16 %v92
    %v689 = vunpack.c.h.b16 %v92
    %v690 = vunpack.c.l.b16 %v93
    %v691 = vunpack.c.h.b16 %v93
    %v692 = vunpack.c.l.b16 %v94
    %v693 = vunpack.c.h.b16 %v94
    %v694 = vunpack.c.l.b16 %v95
    %v695 = vunpack.c.h.b16 %v95
    %v696 = vunpack.c.l.b16 %v96
    %v697 = vunpack.c.h.b16 %v96
    %v698 = vunpack.c.l.b16 %v97
    %v699 = vunpack.c.h.b16 %v97
    %v700 = vunpack.c.l.b16 %v98
    %v701 = vunpack.c.h.b16 %v98
    %v702 = vunpack.c.l.b16 %v99
    %v703 = vunpack.c.h.b16 %v99
    %v704 = vunpack.c.l.b16 %v100
    %v705 = vunpack.c.h.b16 %v100
    %v706 = vunpack.c.l.b16 %v101
    %v707 = vunpack.c.h.b16 %v101
    %v708 = vunpack.c.l.b16 %v102
    %v709 = vunpack.c.h.b16 %v102
    %v710 = vunpack.c.l.b16 %v103
    %v711 = vunpack.c.h.b16 %v103
    %v712 = vunpack.c.l.b16 %v104
    %v713 = vunpack.c.h.b16 %v104
    %v714 = vunpack.c.l.b16 %v105
    %v715 = vunpack.c.h.b16 %v105
    %v716 = vunpack.c.l.b16 %v106
    %v717 = vunpack.c.h.b16 %v106
    %v718 = vunpack.c.l.b16 %v107
    %v719 = vunpack.c.h.b16 %v107
    %v720 = vunpack.c.l.b16 %v108
    %v721 = vunpack.c.h.b16 %v108
    %v722 = vunpack.c.l.b16 %v109
    %v723 = vunpack.c.h.b16 %v109
    %v724 = vunpack.c.l.b16 %v110
    %v725 = vunpack.c.h.b16 %v110
    %v726 = vunpack.c.l.b16 %v111
    %v727 = vunpack.c.h.b16 %v111
    %v728 = vunpack.c.l.b16 %v112
    %v729 = vunpack.c.h.b16 %v112
    %v730 = vunpack.c.l.b16 %v113
    %v731 = vunpack.c.h.b16 %v113
    %v732 = vunpack.c.l.b16 %v114
    %v733 = vunpack.c.h.b16 %v114
    %v734 = vunpack.c.l.b16 %v115
    %v735 = vunpack.c.h.b16 %v115
    %v736 = vunpack.c.l.b16 %v116
    %v737 = vunpack.c.h.b16 %v116
    %v738 = vunpack.c.l.b16 %v117
    %v739 = vunpack.c.h.b16 %v117
    %v740 = vunpack.c.l.b16 %v118
    %v741 = vunpack.c.h.b16 %v118
    %v742 = vunpack.c.l.b16 %v119
    %v743 = vunpack.c.h.b16 %v119
    %v744 = vunpack.c.l.b16 %v120
    %v745 = vunpack.c.h.b16 %v120
    %v746 = vunpack.c.l.b16 %v121
    %v747 = vunpack.c.h.b16 %v121
    %v748 = vunpack.c.l.b16 %v122
    %v749 = vunpack.c.h.b16 %v122
    %v750 = vunpack.c.l.b16 %v123
    %v751 = vunpack.c.h.b16 %v123
    %v752 = vunpack.c.l.b16 %v124
    %v753 = vunpack.c.h.b16 %v124
    %v754 = vunpack.c.l.b16 %v125
    %v755 = vunpack.c.h.b16 %v125
    %v756 = vunpack.c.l.b16 %v126
    %v757 = vunpack.c.h.b16 %v126
    %v758 = vunpack.c.l.b16 %v127
    %v759 = vunpack.c.h.b16 %v127
    %v760 = vunpack.c.l.b16 %v128
    %v761 = vunpack.c.h.b16 %v128
    %v762 = vunpack.c.l.b16 %v129
    %v763 = vunpack.c.h.b16 %v129
    %v764 = vunpack.c.l.b16 %v130
    %v765 = vunpack.c.h.b16 %v130
    %v766 = vunpack.c.l.b16 %v131
    %v767 = vunpack.c.h.b16 %v131
    %v768 = vunpack.c.l.b16 %v132
    %v769 = vunpack.c.h.b16 %v132
    %v770 = vunpack.c.l.b16 %v133
    %v771 = vunpack.c.h.b16 %v133
    %v772 = vunpack.c.l.b16 %v134
    %v773 = vunpack.c.h.b16 %v134
    %v774 = vunpack.c.l.b16 %v135
    %v775 = vunpack.c.h.b16 %v135
    %v776 = vunpack.c.l.b16 %v136
    %v777 = vunpack.c.h.b16 %v136
    %v778 = vunpack.c.l.b16 %v137
    %v779 = vunpack.c.h.b16 %v137
    %v780 = vunpack.c.l.b16 %v138
    %v781 = vunpack.c.h.b16 %v138
    %v782 = vunpack.c.l.b16 %v139
    %v783 = vunpack.c.h.b16 %v139
    %v784 = vunpack.c.l.b16 %v140
    %v785 = vunpack.c.h.b16 %v140
    %v786 = vunpack.c.l.b16 %v141
    %v787 = vunpack.c.h.b16 %v141
    %v788 = vunpack.c.l.b16 %v142
    %v789 = vunpack.c.h.b16 %v142
    %v790 = vunpack.c.l.b16 %v143
    %v791 = vunpack.c.h.b16 %v143
    %v792 = vunpack.c.l.b16 %v144
    %v793 = vunpack.c.h.b16 %v144
    %v794 = vunpack.c.l.b16 %v145
    %v795 = vunpack.c.h.b16 %v145
    %v796 = vunpack.c.l.b16 %v146
    %v797 = vunpack.c.h.b16 %v146
    %v798 = vunpack.c.l.b16 %v147
    %v799 = vunpack.c.h.b16 %v147
    %v800 = vunpack.c.l.b16 %v148
    %v801 = vunpack.c.h.b16 %v148
    %v802 = vunpack.c.l.b16 %v149
    %v803 = vunpack.c.h.b16 %v149
    %v804 = vunpack.c.l.b16 %v150
    %v805 = vunpack.c.h.b16 %v150
    %v806 = vunpack.c.l.b16 %v151
    %v807 = vunpack.c.h.b16 %v151
    %v808 = vunpack.c.l.b16 %v152
    %v809 = vunpack.c.h.b16 %v152
    %v810 = vunpack.c.l.b16 %v153
    %v811 = vunpack.c.h.b16 %v153
    %v812 = vunpack.c.l.b16 %v154
    %v813 = vunpack.c.h.b16 %v154
    %v814 = vunpack.c.l.b16 %v155
    %v815 = vunpack.c.h.b16 %v155
    %v816 = vunpack.c.l.b16 %v156
    %v817 = vunpack.c.h.b16 %v156
    %v818 = vunpack.c.l.b16 %v157
    %v819 = vunpack.c.h.b16 %v157
    %v820 = vunpack.c.l.b16 %v158
    %v821 = vunpack.c.h.b16 %v158
    %v822 = vunpack.c.l.b16 %v159
    %v823 = vunpack.c.h.b16 %v159
    %v824 = vunpack.c.l.b16 %v160
    %v825 = vunpack.c.h.b16 %v160
    %v826 = vunpack.c.l.b16 %v161
    %v827 = vunpack.c.h.b16 %v161
    %v828 = vunpack.c.l.b16 %v162
    %v829 = vunpack.c.h.b16 %v162
    %v830 = vunpack.c.l.b16 %v163
    %v831 = vunpack.c.h.b16 %v163
    %v832 = vunpack.c.l.b16 %v164
    %v833 = vunpack.c.h.b16 %v164
    %v834 = vunpack.c.l.b16 %v165
    %v835 = vunpack.c.h.b16 %v165
    %v836 = vunpack.c.l.b16 %v166
    %v837 = vunpack.c.h.b16 %v166
    %v838 = vunpack.c.l.b16 %v167
    %v839 = vunpack.c.h.b16 %v167
    %v840 = vunpack.c.l.b16 %v168
    %v841 = vunpack.c.h.b16 %v168
    %v842 = vunpack.c.l.b16 %v169
    %v843 = vunpack.c.h.b16 %v169
    %v844 = vunpack.c.l.b16 %v170
    %v845 = vunpack.c.h.b16 %v170
    %v846 = vunpack.c.l.b16 %v171
    %v847 = vunpack.c.h.b16 %v171
    %v848 = vunpack.c.l.b16 %v172
    %v849 = vunpack.c.h.b16 %v172
    %v850 = vunpack.c.l.b16 %v173
    %v851 = vunpack.c.h.b16 %v173
    %v852 = vunpack.c.l.b16 %v174
    %v853 = vunpack.c.h.b16 %v174
    %v854 = vunpack.c.l.b16 %v175
    %v855 = vunpack.c.h.b16 %v175
    %v856 = vunpack.c.l.b16 %v176
    %v857 = vunpack.c.h.b16 %v176
    %v858 = vunpack.c.l.b16 %v177
    %v859 = vunpack.c.h.b16 %v177
    %v860 = vunpack.c.l.b16 %v178
    %v861 = vunpack.c.h.b16 %v178
    %v862 = vunpack.c.l.b16 %v179
    %v863 = vunpack.c.h.b16 %v179
    %v864 = vunpack.c.l.b16 %v180
    %v865 = vunpack.c.h.b16 %v180
    %v866 = vunpack.c.l.b16 %v181
    %v867 = vunpack.c.h.b16 %v181
    %v868 = vunpack.c.l.b16 %v182
    %v869 = vunpack.c.h.b16 %v182
    %v870 = vunpack.c.l.b16 %v183
    %v871 = vunpack.c.h.b16 %v183
    %v872 = vunpack.c.l.b16 %v184
    %v873 = vunpack.c.h.b16 %v184
    %v874 = vunpack.c.l.b16 %v185
    %v875 = vunpack.c.h.b16 %v185
    %v876 = vunpack.c.l.b16 %v186
    %v877 = vunpack.c.h.b16 %v186
    %v878 = vunpack.c.l.b16 %v187
    %v879 = vunpack.c.h.b16 %v187
    %v880 = vunpack.c.l.b16 %v188
    %v881 = vunpack.c.h.b16 %v188
    %v882 = vunpack.c.l.b16 %v189
    %v883 = vunpack.c.h.b16 %v189
    %v884 = vunpack.c.l.b16 %v190
    %v885 = vunpack.c.h.b16 %v190
    %v886 = vunpack.c.l.b16 %v191
    %v887 = vunpack.c.h.b16 %v191
    %v888 = vunpack.c.l.b16 %v192
    %v889 = vunpack.c.h.b16 %v192
    %v890 = vunpack.c.l.b16 %v193
    %v891 = vunpack.c.h.b16 %v193
    %v892 = vunpack.c.l.b16 %v194
    %v893 = vunpack.c.h.b16 %v194
    %v894 = vunpack.c.l.b16 %v195
    %v895 = vunpack.c.h.b16 %v195
    %v896 = vunpack.c.l.b16 %v196
    %v897 = vunpack.c.h.b16 %v196
    %v898 = vunpack.c.l.b16 %v197
    %v899 = vunpack.c.h.b16 %v197
    %v900 = vunpack.c.l.b16 %v198
    %v901 = vunpack.c.h.b16 %v198
    %v902 = vunpack.c.l.b16 %v199
    %v903 = vunpack.c.h.b16 %v199
    %v904 = vunpack.c.l.b16 %v200
    %v905 = vunpack.c.h.b16 %v200
    %v906 = vunpack.c.l.b16 %v201
    %v907 = vunpack.c.h.b16 %v201
    %v908 = vunpack.c.l.b16 %v202
    %v909 = vunpack.c.h.b16 %v202
    %v910 = vunpack.c.l.b16 %v203
    %v911 = vunpack.c.h.b16 %v203
    %v912 = vunpack.c.l.b16 %v204
    %v913 = vunpack.c.h.b16 %v204
    %v914 = vunpack.c.l.b16 %v205
    %v915 = vunpack.c.h.b16 %v205
    %v916 = vunpack.c.l.b16 %v206
    %v917 = vunpack.c.h.b16 %v206
    %v918 = vunpack.c.l.b16 %v207
    %v919 = vunpack.c.h.b16 %v207
    %v920 = vunpack.c.l.b16 %v208
    %v921 = vunpack.c.h.b16 %v208
    %v922 = vunpack.c.l.b16 %v209
    %v923 = vunpack.c.h.b16 %v209
    %v924 = vunpack.c.l.b16 %v210
    %v925 = vunpack.c.h.b16 %v210
    %v926 = vunpack.c.l.b16 %v211
    %v927 = vunpack.c.h.b16 %v211
    %v928 = vunpack.c.l.b16 %v212
    %v929 = vunpack.c.h.b16 %v212
    %v930 = vunpack.c.l.b16 %v213
    %v931 = vunpack.c.h.b16 %v213
    %v932 = vunpack.c.l.b16 %v214
    %v933 = vunpack.c.h.b16 %v214
    %v934 = vunpack.c.l.b16 %v215
    %v935 = vunpack.c.h.b16 %v215
    %v936 = vunpack.c.l.b16 %v216
    %v937 = vunpack.c.h.b16 %v216
    %v938 = vunpack.c.l.b16 %v217
    %v939 = vunpack.c.h.b16 %v217
    %v940 = vunpack.c.l.b16 %v218
    %v941 = vunpack.c.h.b16 %v218
    %v942 = vunpack.c.l.b16 %v219
    %v943 = vunpack.c.h.b16 %v219
    %v944 = vunpack.c.l.b16 %v220
    %v945 = vunpack.c.h.b16 %v220
    %v946 = vunpack.c.l.b16 %v221
    %v947 = vunpack.c.h.b16 %v221
    %v948 = vunpack.c.l.b16 %v222
    %v949 = vunpack.c.h.b16 %v222
    %v950 = vunpack.c.l.b16 %v223
    %v951 = vunpack.c.h.b16 %v223
    %v952 = vunpack.c.l.b16 %v224
    %v953 = vunpack.c.h.b16 %v224
    %v954 = vunpack.c.l.b16 %v225
    %v955 = vunpack.c.h.b16 %v225
    %v956 = vunpack.c.l.b16 %v226
    %v957 = vunpack.c.h.b16 %v226
    %v958 = vunpack.c.l.b16 %v227
    %v959 = vunpack.c.h.b16 %v227
    %v960 = vunpack.c.l.b16 %v228
    %v961 = vunpack.c.h.b16 %v228
    %v962 = vunpack.c.l.b16 %v229
    %v963 = vunpack.c.h.b16 %v229
    %v964 = vunpack.c.l.b16 %v230
    %v965 = vunpack.c.h.b16 %v230
    %v966 = vunpack.c.l.b16 %v231
    %v967 = vunpack.c.h.b16 %v231
    %v968 = vunpack.c.l.b16 %v232
    %v969 = vunpack.c.h.b16 %v232
    %v970 = vunpack.c.l.b16 %v233
    %v971 = vunpack.c.h.b16 %v233
    %v972 = vunpack.c.l.b16 %v234
    %v973 = vunpack.c.h.b16 %v234
    %v974 = vunpack.c.l.b16 %v235
    %v975 = vunpack.c.h.b16 %v235
    %v976 = vunpack.c.l.b16 %v236
    %v977 = vunpack.c.h.b16 %v236
    %v978 = vunpack.c.l.b16 %v237
    %v979 = vunpack.c.h.b16 %v237
    %v980 = vunpack.c.l.b16 %v238
    %v981 = vunpack.c.h.b16 %v238
    %v982 = vunpack.c.l.b16 %v239
    %v983 = vunpack.c.h.b16 %v239
    %v984 = vunpack.c.l.b16 %v240
    %v985 = vunpack.c.h.b16 %v240
    %v986 = vunpack.c.l.b16 %v241
    %v987 = vunpack.c.h.b16 %v241
    %v988 = vunpack.c.l.b16 %v242
    %v989 = vunpack.c.h.b16 %v242
    %v990 = vunpack.c.l.b16 %v243
    %v991 = vunpack.c.h.b16 %v243
    %v992 = vunpack.c.l.b16 %v244
    %v993 = vunpack.c.h.b16 %v244
    %v994 = vunpack.c.l.b16 %v245
    %v995 = vunpack.c.h.b16 %v245
    %v996 = vunpack.c.l.b16 %v246
    %v997 = vunpack.c.h.b16 %v246
    %v998 = vunpack.c.l.b16 %v247
    %v999 = vunpack.c.h.b16 %v247
    %v1000 = vunpack.c.l.b16 %v248
    %v1001 = vunpack.c.h.b16 %v248
    %v1002 = vunpack.c.l.b16 %v249
    %v1003 = vunpack.c.h.b16 %v249
    %v1004 = vunpack.c.l.b16 %v250
    %v1005 = vunpack.c.h.b16 %v250
    %v1006 = vunpack.c.l.b16 %v251
    %v1007 = vunpack.c.h.b16 %v251
    %v1008 = vunpack.c.l.b16 %v252
    %v1009 = vunpack.c.h.b16 %v252
    %v1010 = vunpack.c.l.b16 %v253
    %v1011 = vunpack.c.h.b16 %v253
    %v1012 = vunpack.c.l.b16 %v254
    %v1013 = vunpack.c.h.b16 %v254
    %v1014 = vunpack.c.l.b16 %v255
    %v1015 = vunpack.c.h.b16 %v255
    %v1016 = vunpack.c.l.b16 %v256
    %v1017 = vunpack.c.h.b16 %v256
    %v1018 = vunpack.c.l.b16 %v257
    %v1019 = vunpack.c.h.b16 %v257
    %v1020 = vunpack.c.l.b16 %v258
    %v1021 = vunpack.c.h.b16 %v258
    %v1022 = vunpack.c.l.b16 %v259
    %v1023 = vunpack.c.h.b16 %v259
    %v1024 = vunpack.c.l.b16 %v260
    %v1025 = vunpack.c.h.b16 %v260
    %v1026 = vunpack.c.l.b16 %v261
    %v1027 = vunpack.c.h.b16 %v261
    %v1028 = vunpack.c.l.b16 %v262
    %v1029 = vunpack.c.h.b16 %v262
    %v1030 = vunpack.c.l.b16 %v263
    %v1031 = vunpack.c.h.b16 %v263
    %v1032 = vunpack.c.l.b16 %v264
    %v1033 = vunpack.c.h.b16 %v264
    %v1034 = vunpack.c.l.b16 %v265
    %v1035 = vunpack.c.h.b16 %v265
    %v1036 = vunpack.c.l.b16 %v266
    %v1037 = vunpack.c.h.b16 %v266
    %v1038 = vunpack.c.l.b16 %v267
    %v1039 = vunpack.c.h.b16 %v267
    %v1040 = vunpack.c.l.b16 %v268
    %v1041 = vunpack.c.h.b16 %v268
    %v1042 = vunpack.c.l.b16 %v269
    %v1043 = vunpack.c.h.b16 %v269
    %v1044 = vunpack.c.l.b16 %v270
    %v1045 = vunpack.c.h.b16 %v270
    %v1046 = vunpack.c.l.b16 %v271
    %v1047 = vunpack.c.h.b16 %v271
    %v1048 = vunpack.c.l.b16 %v272
    %v1049 = vunpack.c.h.b16 %v272
    %v1050 = vunpack.c.l.b16 %v273
    %v1051 = vunpack.c.h.b16 %v273
    %v1052 = vunpack.c.l.b16 %v274
    %v1053 = vunpack.c.h.b16 %v274
    %v1054 = vunpack.c.l.b16 %v275
    %v1055 = vunpack.c.h.b16 %v275
    %v1056 = vunpack.c.l.b16 %v276
    %v1057 = vunpack.c.h.b16 %v276
    %v1058 = vunpack.c.l.b16 %v277
    %v1059 = vunpack.c.h.b16 %v277
    %v1060 = vunpack.c.l.b16 %v278
    %v1061 = vunpack.c.h.b16 %v278
    %v1062 = vunpack.c.l.b16 %v279
    %v1063 = vunpack.c.h.b16 %v279
    %v1064 = vunpack.c.l.b16 %v280
    %v1065 = vunpack.c.h.b16 %v280
    %v1066 = vunpack.c.l.b16 %v281
    %v1067 = vunpack.c.h.b16 %v281
    %v1068 = vunpack.c.l.b16 %v282
    %v1069 = vunpack.c.h.b16 %v282
    %v1070 = vunpack.c.l.b16 %v283
    %v1071 = vunpack.c.h.b16 %v283
    %v1072 = vunpack.c.l.b16 %v284
    %v1073 = vunpack.c.h.b16 %v284
    %v1074 = vunpack.c.l.b16 %v285
    %v1075 = vunpack.c.h.b16 %v285
    %v1076 = vunpack.c.l.b16 %v286
    %v1077 = vunpack.c.h.b16 %v286
    %v1078 = vunpack.c.l.b16 %v287
    %v1079 = vunpack.c.h.b16 %v287
    %v1080 = vunpack.c.l.b16 %v288
    %v1081 = vunpack.c.h.b16 %v288
    %v1082 = vunpack.c.l.b16 %v289
    %v1083 = vunpack.c.h.b16 %v289
    %v1084 = vunpack.c.l.b16 %v290
    %v1085 = vunpack.c.h.b16 %v290
    %v1086 = vunpack.c.l.b16 %v291
    %v1087 = vunpack.c.h.b16 %v291
    %v1088 = vunpack.c.l.b16 %v292
    %v1089 = vunpack.c.h.b16 %v292
    %v1090 = vunpack.c.l.b16 %v293
    %v1091 = vunpack.c.h.b16 %v293
    %v1092 = vunpack.c.l.b16 %v294
    %v1093 = vunpack.c.h.b16 %v294
    %v1094 = vunpack.c.l.b16 %v295
    %v1095 = vunpack.c.h.b16 %v295
    %v1096 = vunpack.c.l.b16 %v296
    %v1097 = vunpack.c.h.b16 %v296
    %v1098 = vunpack.c.l.b16 %v297
    %v1099 = vunpack.c.h.b16 %v297
    %v1100 = vunpack.c.l.b16 %v298
    %v1101 = vunpack.c.h.b16 %v298
    %v1102 = vunpack.c.l.b16 %v299
    %v1103 = vunpack.c.h.b16 %v299
    %v1104 = vunpack.c.l.b16 %v300
    %v1105 = vunpack.c.h.b16 %v300
    %v1106 = vunpack.c.l.b16 %v301
    %v1107 = vunpack.c.h.b16 %v301
    %v1108 = vunpack.c.l.b16 %v302
    %v1109 = vunpack.c.h.b16 %v302
    %v1110 = vunpack.c.l.b16 %v303
    %v1111 = vunpack.c.h.b16 %v303
    %v1112 = vunpack.c.l.b16 %v304
    %v1113 = vunpack.c.h.b16 %v304
    %v1114 = vunpack.c.l.b16 %v305
    %v1115 = vunpack.c.h.b16 %v305
    %v1116 = vunpack.c.l.b16 %v306
    %v1117 = vunpack.c.h.b16 %v306
    %v1118 = vunpack.c.l.b16 %v307
    %v1119 = vunpack.c.h.b16 %v307
    %v1120 = vunpack.c.l.b16 %v308
    %v1121 = vunpack.c.h.b16 %v308
    %v1122 = vunpack.c.l.b16 %v309
    %v1123 = vunpack.c.h.b16 %v309
    %v1124 = vunpack.c.l.b16 %v310
    %v1125 = vunpack.c.h.b16 %v310
    %v1126 = vunpack.c.l.b16 %v311
    %v1127 = vunpack.c.h.b16 %v311
    %v1128 = vunpack.c.l.b16 %v312
    %v1129 = vunpack.c.h.b16 %v312
    %v1130 = vunpack.c.l.b16 %v313
    %v1131 = vunpack.c.h.b16 %v313
    %v1132 = vunpack.c.l.b16 %v314
    %v1133 = vunpack.c.h.b16 %v314
    %v1134 = vunpack.c.l.b16 %v315
    %v1135 = vunpack.c.h.b16 %v315
    %v1136 = vunpack.c.l.b16 %v316
    %v1137 = vunpack.c.h.b16 %v316
    %v1138 = vunpack.c.l.b16 %v317
    %v1139 = vunpack.c.h.b16 %v317
    %v1140 = vunpack.c.l.b16 %v318
    %v1141 = vunpack.c.h.b16 %v318
    %v1142 = vunpack.c.l.b16 %v319
    %v1143 = vunpack.c.h.b16 %v319
    %v1144 = vunpack.c.l.b16 %v320
    %v1145 = vunpack.c.h.b16 %v320
    %v1146 = vunpack.c.l.b16 %v321
    %v1147 = vunpack.c.h.b16 %v321
    %v1148 = vunpack.c.l.b16 %v322
    %v1149 = vunpack.c.h.b16 %v322
    %v1150 = vunpack.c.l.b16 %v323
    %v1151 = vunpack.c.h.b16 %v323
    %v1152 = vunpack.c.l.b16 %v324
    %v1153 = vunpack.c.h.b16 %v324
    %v1154 = vunpack.c.l.b16 %v325
    %v1155 = vunpack.c.h.b16 %v325
    %v1156 = vpack.c.b16 %v648, %v644
    %v1157 = vpack.c.b16 %v649, %v645
    %v1158 = vpack.c.b16 %v650, %v646
    %v1159 = vpack.c.b16 %v651, %v647
    %v1160 = vpack.c.b16 %v656, %v652
    %v1161 = vpack.c.b16 %v657, %v653
    %v1162 = vpack.c.b16 %v658, %v654
    %v1163 = vpack.c.b16 %v659, %v655
    %v1164 = vpack.c.b16 %v664, %v660
    %v1165 = vpack.c.b16 %v665, %v661
    %v1166 = vpack.c.b16 %v666, %v662
    %v1167 = vpack.c.b16 %v667, %v663
    %v1168 = vpack.c.b16 %v672, %v668
    %v1169 = vpack.c.b16 %v673, %v669
    %v1170 = vpack.c.b16 %v674, %v670
    %v1171 = vpack.c.b16 %v675, %v671
    %v1172 = vpack.c.b16 %v680, %v676
    %v1173 = vpack.c.b16 %v681, %v677
    %v1174 = vpack.c.b16 %v682, %v678
    %v1175 = vpack.c.b16 %v683, %v679
    %v1176 = vpack.c.b16 %v688, %v684
    %v1177 = vpack.c.b16 %v689, %v685
    %v1178 = vpack.c.b16 %v690, %v686
    %v1179 = vpack.c.b16 %v691, %v687
    %v1180 = vpack.c.b16 %v696, %v692
    %v1181 = vpack.c.b16 %v697, %v693
    %v1182 = vpack.c.b16 %v698, %v694
    %v1183 = vpack.c.b16 %v699, %v695
    %v1184 = vpack.c.b16 %v704, %v700
    %v1185 = vpack.c.b16 %v705, %v701
    %v1186 = vpack.c.b16 %v706, %v702
    %v1187 = vpack.c.b16 %v707, %v703
    %v1188 = vpack.c.b16 %v712, %v708
    %v1189 = vpack.c.b16 %v713, %v709
    %v1190 = vpack.c.b16 %v714, %v710
    %v1191 = vpack.c.b16 %v715, %v711
    %v1192 = vpack.c.b16 %v720, %v716
    %v1193 = vpack.c.b16 %v721, %v717
    %v1194 = vpack.c.b16 %v722, %v718
    %v1195 = vpack.c.b16 %v723, %v719
    %v1196 = vpack.c.b16 %v728, %v724
    %v1197 = vpack.c.b16 %v729, %v725
    %v1198 = vpack.c.b16 %v730, %v726
    %v1199 = vpack.c.b16 %v731, %v727
    %v1200 = vpack.c.b16 %v736, %v732
    %v1201 = vpack.c.b16 %v737, %v733
    %v1202 = vpack.c.b16 %v738, %v734
    %v1203 = vpack.c.b16 %v739, %v735
    %v1204 = vpack.c.b16 %v744, %v740
    %v1205 = vpack.c.b16 %v745, %v741
    %v1206 = vpack.c.b16 %v746, %v742
    %v1207 = vpack.c.b16 %v747, %v743
    %v1208 = vpack.c.b16 %v752, %v748
    %v1209 = vpack.c.b16 %v753, %v749
    %v1210 = vpack.c.b16 %v754, %v750
    %v1211 = vpack.c.b16 %v755, %v751
    %v1212 = vpack.c.b16 %v760, %v756
    %v1213 = vpack.c.b16 %v761, %v757
    %v1214 = vpack.c.b16 %v762, %v758
    %v1215 = vpack.c.b16 %v763, %v759
    %v1216 = vpack.c.b16 %v768, %v764
    %v1217 = vpack.c.b16 %v769, %v765
    %v1218 = vpack.c.b16 %v770, %v766
    %v1219 = vpack.c.b16 %v771, %v767
    %v1220 = vpack.c.b16 %v776, %v772
    %v1221 = vpack.c.b16 %v777, %v773
    %v1222 = vpack.c.b16 %v778, %v774
    %v1223 = vpack.c.b16 %v779, %v775
    %v1224 = vpack.c.b16 %v784, %v780
    %v1225 = vpack.c.b16 %v785, %v781
    %v1226 = vpack.c.b16 %v786, %v782
    %v1227 = vpack.c.b16 %v787, %v783
    %v1228 = vpack.c.b16 %v792, %v788
    %v1229 = vpack.c.b16 %v793, %v789
    %v1230 = vpack.c.b16 %v794, %v790
    %v1231 = vpack.c.b16 %v795, %v791
    %v1232 = vpack.c.b16 %v800, %v796
    %v1233 = vpack.c.b16 %v801, %v797
    %v1234 = vpack.c.b16 %v802, %v798
    %v1235 = vpack.c.b16 %v803, %v799
    %v1236 = vpack.c.b16 %v808, %v804
    %v1237 = vpack.c.b16 %v809, %v805
    %v1238 = vpack.c.b16 %v810, %v806
    %v1239 = vpack.c.b16 %v811, %v807
    %v1240 = vpack.c.b16 %v816, %v812
    %v1241 = vpack.c.b16 %v817, %v813
    %v1242 = vpack.c.b16 %v818, %v814
    %v1243 = vpack.c.b16 %v819, %v815
    %v1244 = vpack.c.b16 %v824, %v820
    %v1245 = vpack.c.b16 %v825, %v821
    %v1246 = vpack.c.b16 %v826, %v822
    %v1247 = vpack.c.b16 %v827, %v823
    %v1248 = vpack.c.b16 %v832, %v828
    %v1249 = vpack.c.b16 %v833, %v829
    %v1250 = vpack.c.b16 %v834, %v830
    %v1251 = vpack.c.b16 %v835, %v831
    %v1252 = vpack.c.b16 %v840, %v836
    %v1253 = vpack.c.b16 %v841, %v837
    %v1254 = vpack.c.b16 %v842, %v838
    %v1255 = vpack.c.b16 %v843, %v839
    %v1256 = vpack.c.b16 %v848, %v844
    %v1257 = vpack.c.b16 %v849, %v845
    %v1258 = vpack.c.b16 %v850, %v846
    %v1259 = vpack.c.b16 %v851, %v847
    %v1260 = vpack.c.b16 %v856, %v852
    %v1261 = vpack.c.b16 %v857, %v853
    %v1262 = vpack.c.b16 %v858, %v854
    %v1263 = vpack.c.b16 %v859, %v855
    %v1264 = vpack.c.b16 %v864, %v860
    %v1265 = vpack.c.b16 %v865, %v861
    %v1266 = vpack.c.b16 %v866, %v862
    %v1267 = vpack.c.b16 %v867, %v863
    %v1268 = vpack.c.b16 %v872, %v868
    %v1269 = vpack.c.b16 %v873, %v869
    %v1270 = vpack.c.b16 %v874, %v870
    %v1271 = vpack.c.b16 %v875, %v871
    %v1272 = vpack.c.b16 %v880, %v876
    %v1273 = vpack.c.b16 %v881, %v877
    %v1274 = vpack.c.b16 %v882, %v878
    %v1275 = vpack.c.b16 %v883, %v879
    %v1276 = vpack.c.b16 %v888, %v884
    %v1277 = vpack.c.b16 %v889, %v885
    %v1278 = vpack.c.b16 %v890, %v886
    %v1279 = vpack.c.b16 %v891, %v887
    %v1280 = vpack.c.b16 %v896, %v892
    %v1281 = vpack.c.b16 %v897, %v893
    %v1282 = vpack.c.b16 %v898, %v894
    %v1283 = vpack.c.b16 %v899, %v895
    %v1284 = vpack.c.b16 %v904, %v900
    %v1285 = vpack.c.b16 %v905, %v901
    %v1286 = vpack.c.b16 %v906, %v902
    %v1287 = vpack.c.b16 %v907, %v903
    %v1288 = vpack.c.b16 %v912, %v908
    %v1289 = vpack.c.b16 %v913, %v909
    %v1290 = vpack.c.b16 %v914, %v910
    %v1291 = vpack.c.b16 %v915, %v911
    %v1292 = vpack.c.b16 %v920, %v916
    %v1293 = vpack.c.b16 %v921, %v917
    %v1294 = vpack.c.b16 %v922, %v918
    %v1295 = vpack.c.b16 %v923, %v919
    %v1296 = vpack.c.b16 %v928, %v924
    %v1297 = vpack.c.b16 %v929, %v925
    %v1298 = vpack.c.b16 %v930, %v926
    %v1299 = vpack.c.b16 %v931, %v927
    %v1300 = vpack.c.b16 %v936, %v932
    %v1301 = vpack.c.b16 %v937, %v933
    %v1302 = vpack.c.b16 %v938, %v934
    %v1303 = vpack.c.b16 %v939, %v935
    %v1304 = vpack.c.b16 %v944, %v940
    %v1305 = vpack.c.b16 %v945, %v941
    %v1306 = vpack.c.b16 %v946, %v942
    %v1307 = vpack.c.b16 %v947, %v943
    %v1308 = vpack.c.b16 %v952, %v948
    %v1309 = vpack.c.b16 %v953, %v949
    %v1310 = vpack.c.b16 %v954, %v950
    %v1311 = vpack.c.b16 %v955, %v951
    %v1312 = vpack.c.b16 %v960, %v956
    %v1313 = vpack.c.b16 %v961, %v957
    %v1314 = vpack.c.b16 %v962, %v958
    %v1315 = vpack.c.b16 %v963, %v959
    %v1316 = vpack.c.b16 %v968, %v964
    %v1317 = vpack.c.b16 %v969, %v965
    %v1318 = vpack.c.b16 %v970, %v966
    %v1319 = vpack.c.b16 %v971, %v967
    %v1320 = vpack.c.b16 %v976, %v972
    %v1321 = vpack.c.b16 %v977, %v973
    %v1322 = vpack.c.b16 %v978, %v974
    %v1323 = vpack.c.b16 %v979, %v975
    %v1324 = vpack.c.b16 %v984, %v980
    %v1325 = vpack.c.b16 %v985, %v981
    %v1326 = vpack.c.b16 %v986, %v982
    %v1327 = vpack.c.b16 %v987, %v983
    %v1328 = vpack.c.b16 %v992, %v988
    %v1329 = vpack.c.b16 %v993, %v989
    %v1330 = vpack.c.b16 %v994, %v990
    %v1331 = vpack.c.b16 %v995, %v991
    %v1332 = vpack.c.b16 %v1000, %v996
    %v1333 = vpack.c.b16 %v1001, %v997
    %v1334 = vpack.c.b16 %v1002, %v998
    %v1335 = vpack.c.b16 %v1003, %v999
    %v1336 = vpack.c.b16 %v1008, %v1004
    %v1337 = vpack.c.b16 %v1009, %v1005
    %v1338 = vpack.c.b16 %v1010, %v1006
    %v1339 = vpack.c.b16 %v1011, %v1007
    %v1340 = vpack.c.b16 %v1016, %v1012
    %v1341 = vpack.c.b16 %v1017, %v1013
    %v1342 = vpack.c.b16 %v1018, %v1014
    %v1343 = vpack.c.b16 %v1019, %v1015
    %v1344 = vpack.c.b16 %v1024, %v1020
    %v1345 = vpack.c.b16 %v1025, %v1021
    %v1346 = vpack.c.b16 %v1026, %v1022
    %v1347 = vpack.c.b16 %v1027, %v1023
    %v1348 = vpack.c.b16 %v1032, %v1028
    %v1349 = vpack.c.b16 %v1033, %v1029
    %v1350 = vpack.c.b16 %v1034, %v1030
    %v1351 = vpack.c.b16 %v1035, %v1031
    %v1352 = vpack.c.b16 %v1040, %v1036
    %v1353 = vpack.c.b16 %v1041, %v1037
    %v1354 = vpack.c.b16 %v1042, %v1038
    %v1355 = vpack.c.b16 %v1043, %v1039
    %v1356 = vpack.c.b16 %v1048, %v1044
    %v1357 = vpack.c.b16 %v1049, %v1045
    %v1358 = vpack.c.b16 %v1050, %v1046
    %v1359 = vpack.c.b16 %v1051, %v1047
    %v1360 = vpack.c.b16 %v1056, %v1052
    %v1361 = vpack.c.b16 %v1057, %v1053
    %v1362 = vpack.c.b16 %v1058, %v1054
    %v1363 = vpack.c.b16 %v1059, %v1055
    %v1364 = vpack.c.b16 %v1064, %v1060
    %v1365 = vpack.c.b16 %v1065, %v1061
    %v1366 = vpack.c.b16 %v1066, %v1062
    %v1367 = vpack.c.b16 %v1067, %v1063
    %v1368 = vpack.c.b16 %v1072, %v1068
    %v1369 = vpack.c.b16 %v1073, %v1069
    %v1370 = vpack.c.b16 %v1074, %v1070
    %v1371 = vpack.c.b16 %v1075, %v1071
    %v1372 = vpack.c.b16 %v1080, %v1076
    %v1373 = vpack.c.b16 %v1081, %v1077
    %v1374 = vpack.c.b16 %v1082, %v1078
    %v1375 = vpack.c.b16 %v1083, %v1079
    %v1376 = vpack.c.b16 %v1088, %v1084
    %v1377 = vpack.c.b16 %v1089, %v1085
    %v1378 = vpack.c.b16 %v1090, %v1086
    %v1379 = vpack.c.b16 %v1091, %v1087
    %v1380 = vpack.c.b16 %v1096, %v1092
    %v1381 = vpack.c.b16 %v1097, %v1093
    %v1382 = vpack.c.b16 %v1098, %v1094
    %v1383 = vpack.c.b16 %v1099, %v1095
    %v1384 = vpack.c.b16 %v1104, %v1100
    %v1385 = vpack.c.b16 %v1105, %v1101
    %v1386 = vpack.c.b16 %v1106, %v1102
    %v1387 = vpack.c.b16 %v1107, %v1103
    %v1388 = vpack.c.b16 %v1112, %v1108
    %v1389 = vpack.c.b16 %v1113, %v1109
    %v1390 = vpack.c.b16 %v1114, %v1110
    %v1391 = vpack.c.b16 %v1115, %v1111
    %v1392 = vpack.c.b16 %v1120, %v1116
    %v1393 = vpack.c.b16 %v1121, %v1117
    %v1394 = vpack.c.b16 %v1122, %v1118
    %v1395 = vpack.c.b16 %v1123, %v1119
    %v1396 = vpack.c.b16 %v1128, %v1124
    %v1397 = vpack.c.b16 %v1129, %v1125
    %v1398 = vpack.c.b16 %v1130, %v1126
    %v1399 = vpack.c.b16 %v1131, %v1127
    %v1400 = vpack.c.b16 %v1136, %v1132
    %v1401 = vpack.c.b16 %v1137, %v1133
    %v1402 = vpack.c.b16 %v1138, %v1134
    %v1403 = vpack.c.b16 %v1139, %v1135
    %v1404 = vpack.c.b16 %v1144, %v1140
    %v1405 = vpack.c.b16 %v1145, %v1141
    %v1406 = vpack.c.b16 %v1146, %v1142
    %v1407 = vpack.c.b16 %v1147, %v1143
    %v1408 = vpack.c.b16 %v1152, %v1148
    %v1409 = vpack.c.b16 %v1153, %v1149
    %v1410 = vpack.c.b16 %v1154, %v1150
    %v1411 = vpack.c.b16 %v1155, %v1151
    %1668 = vmatprep.subr.bf16.mxu0 %v1157
    %1669 = vmatpush1.bf16.msra.mxu0 %v1156
    %1670 = vmatprep.subr.bf16.mxu0 %v1161
    %1671 = vmatpush1.bf16.msra.mxu0 %v1160
    %1672 = vmatprep.subr.bf16.mxu0 %v1165
    %1673 = vmatpush1.bf16.msra.mxu0 %v1164
    %1674 = vmatprep.subr.bf16.mxu0 %v1169
    %1675 = vmatpush1.bf16.msra.mxu0 %v1168
    %1676 = vmatprep.subr.bf16.mxu0 %v1173
    %1677 = vmatpush1.bf16.msra.mxu0 %v1172
    %1678 = vmatprep.subr.bf16.mxu0 %v1177
    %1679 = vmatpush1.bf16.msra.mxu0 %v1176
    %1680 = vmatprep.subr.bf16.mxu0 %v1181
    %1681 = vmatpush1.bf16.msra.mxu0 %v1180
    %1682 = vmatprep.subr.bf16.mxu0 %v1185
    %1683 = vmatpush1.bf16.msra.mxu0 %v1184
    %1684 = vmatprep.subr.bf16.mxu0 %v1189
    %1685 = vmatpush1.bf16.msra.mxu0 %v1188
    %1686 = vmatprep.subr.bf16.mxu0 %v1193
    %1687 = vmatpush1.bf16.msra.mxu0 %v1192
    %1688 = vmatprep.subr.bf16.mxu0 %v1197
    %1689 = vmatpush1.bf16.msra.mxu0 %v1196
    %1690 = vmatprep.subr.bf16.mxu0 %v1201
    %1691 = vmatpush1.bf16.msra.mxu0 %v1200
    %1692 = vmatprep.subr.bf16.mxu0 %v1205
    %1693 = vmatpush1.bf16.msra.mxu0 %v1204
    %1694 = vmatprep.subr.bf16.mxu0 %v1209
    %1695 = vmatpush1.bf16.msra.mxu0 %v1208
    %1696 = vmatprep.subr.bf16.mxu0 %v1213
    %1697 = vmatpush1.bf16.msra.mxu0 %v1212
    %1698 = vmatprep.subr.bf16.mxu0 %v1217
    %1699 = vmatpush1.bf16.msra.mxu0 %v1216
    %1700 = vmatprep.mubr.bf16.mxu0 %v373
    %1701 = vmatmul.mubr.bf16.gmra.mrb[0].mxu0 %v372
    %v1702 = vpop.f32.mrb[0].mxu0
    %v1703 = vadd.f32 %v331, %v1702
    %v1704 = vpop.f32.mrb[0].mxu0
    %v1705 = vadd.f32 %v335, %v1704
    %v1706 = vpop.f32.mrb[0].mxu0
    %v1707 = vadd.f32 %v331, %v1706
    %v1708 = vpop.f32.mrb[0].mxu0
    %v1709 = vadd.f32 %v335, %v1708
    %1710 = vdwg.mxu0
    %1711 = vmatprep.subr.bf16.mxu0 %v1221
    %1712 = vmatpush1.bf16.msra.mxu0 %v1220
    %1713 = vmatprep.subr.bf16.mxu0 %v1225
    %1714 = vmatpush1.bf16.msra.mxu0 %v1224
    %1715 = vmatprep.subr.bf16.mxu0 %v1229
    %1716 = vmatpush1.bf16.msra.mxu0 %v1228
    %1717 = vmatprep.subr.bf16.mxu0 %v1233
    %1718 = vmatpush1.bf16.msra.mxu0 %v1232
    %1719 = vmatprep.subr.bf16.mxu0 %v1237
    %1720 = vmatpush1.bf16.msra.mxu0 %v1236
    %1721 = vmatprep.subr.bf16.mxu0 %v1241
    %1722 = vmatpush1.bf16.msra.mxu0 %v1240
    %1723 = vmatprep.subr.bf16.mxu0 %v1245
    %1724 = vmatpush1.bf16.msra.mxu0 %v1244
    %1725 = vmatprep.subr.bf16.mxu0 %v1249
    %1726 = vmatpush1.bf16.msra.mxu0 %v1248
    %1727 = vmatprep.subr.bf16.mxu0 %v1253
    %1728 = vmatpush1.bf16.msra.mxu0 %v1252
    %1729 = vmatprep.subr.bf16.mxu0 %v1257
    %1730 = vmatpush1.bf16.msra.mxu0 %v1256
    %1731 = vmatprep.subr.bf16.mxu0 %v1261
    %1732 = vmatpush1.bf16.msra.mxu0 %v1260
    %1733 = vmatprep.subr.bf16.mxu0 %v1265
    %1734 = vmatpush1.bf16.msra.mxu0 %v1264
    %1735 = vmatprep.subr.bf16.mxu0 %v1269
    %1736 = vmatpush1.bf16.msra.mxu0 %v1268
    %1737 = vmatprep.subr.bf16.mxu0 %v1273
    %1738 = vmatpush1.bf16.msra.mxu0 %v1272
    %1739 = vmatprep.subr.bf16.mxu0 %v1277
    %1740 = vmatpush1.bf16.msra.mxu0 %v1276
    %1741 = vmatprep.subr.bf16.mxu0 %v1281
    %1742 = vmatpush1.bf16.msra.mxu0 %v1280
    %1743 = vmatprep.mubr.bf16.mxu0 %v375
    %1744 = vmatmul.mubr.bf16.gmra.mrb[0].mxu0 %v374
    %v1745 = vpop.f32.mrb[0].mxu0
    %v1746 = vadd.f32 %v1703, %v1745
    %v1747 = vpop.f32.mrb[0].mxu0
    %v1748 = vadd.f32 %v1705, %v1747
    %v1749 = vpop.f32.mrb[0].mxu0
    %v1750 = vadd.f32 %v1707, %v1749
    %v1751 = vpop.f32.mrb[0].mxu0
    %v1752 = vadd.f32 %v1709, %v1751
    %1753 = vdwg.mxu0
    %1754 = vmatprep.subr.bf16.mxu0 %v1285
    %1755 = vmatpush1.bf16.msra.mxu0 %v1284
    %1756 = vmatprep.subr.bf16.mxu0 %v1289
    %1757 = vmatpush1.bf16.msra.mxu0 %v1288
    %1758 = vmatprep.subr.bf16.mxu0 %v1293
    %1759 = vmatpush1.bf16.msra.mxu0 %v1292
    %1760 = vmatprep.subr.bf16.mxu0 %v1297
    %1761 = vmatpush1.bf16.msra.mxu0 %v1296
    %1762 = vmatprep.subr.bf16.mxu0 %v1301
    %1763 = vmatpush1.bf16.msra.mxu0 %v1300
    %1764 = vmatprep.subr.bf16.mxu0 %v1305
    %1765 = vmatpush1.bf16.msra.mxu0 %v1304
    %1766 = vmatprep.subr.bf16.mxu0 %v1309
    %1767 = vmatpush1.bf16.msra.mxu0 %v1308
    %1768 = vmatprep.subr.bf16.mxu0 %v1313
    %1769 = vmatpush1.bf16.msra.mxu0 %v1312
    %1770 = vmatprep.subr.bf16.mxu0 %v1317
    %1771 = vmatpush1.bf16.msra.mxu0 %v1316
    %1772 = vmatprep.subr.bf16.mxu0 %v1321
    %1773 = vmatpush1.bf16.msra.mxu0 %v1320
    %1774 = vmatprep.subr.bf16.mxu0 %v1325
    %1775 = vmatpush1.bf16.msra.mxu0 %v1324
    %1776 = vmatprep.subr.bf16.mxu0 %v1329
    %1777 = vmatpush1.bf16.msra.mxu0 %v1328
    %1778 = vmatprep.subr.bf16.mxu0 %v1333
    %1779 = vmatpush1.bf16.msra.mxu0 %v1332
    %1780 = vmatprep.subr.bf16.mxu0 %v1337
    %1781 = vmatpush1.bf16.msra.mxu0 %v1336
    %1782 = vmatprep.subr.bf16.mxu0 %v1341
    %1783 = vmatpush1.bf16.msra.mxu0 %v1340
    %1784 = vmatprep.subr.bf16.mxu0 %v1345
    %1785 = vmatpush1.bf16.msra.mxu0 %v1344
    %1786 = vmatprep.mubr.bf16.mxu0 %v377
    %1787 = vmatmul.mubr.bf16.gmra.mrb[0].mxu0 %v376
    %v1788 = vpop.f32.mrb[0].mxu0
    %v1789 = vadd.f32 %v1746, %v1788
    %v1790 = vpop.f32.mrb[0].mxu0
    %v1791 = vadd.f32 %v1748, %v1790
    %v1792 = vpop.f32.mrb[0].mxu0
    %v1793 = vadd.f32 %v1750, %v1792
    %v1794 = vpop.f32.mrb[0].mxu0
    %v1795 = vadd.f32 %v1752, %v1794
    %1796 = vdwg.mxu0
    %1797 = vmatprep.subr.bf16.mxu0 %v1349
    %1798 = vmatpush1.bf16.msra.mxu0 %v1348
    %1799 = vmatprep.subr.bf16.mxu0 %v1353
    %1800 = vmatpush1.bf16.msra.mxu0 %v1352
    %1801 = vmatprep.subr.bf16.mxu0 %v1357
    %1802 = vmatpush1.bf16.msra.mxu0 %v1356
    %1803 = vmatprep.subr.bf16.mxu0 %v1361
    %1804 = vmatpush1.bf16.msra.mxu0 %v1360
    %1805 = vmatprep.subr.bf16.mxu0 %v1365
    %1806 = vmatpush1.bf16.msra.mxu0 %v1364
    %1807 = vmatprep.subr.bf16.mxu0 %v1369
    %1808 = vmatpush1.bf16.msra.mxu0 %v1368
    %1809 = vmatprep.subr.bf16.mxu0 %v1373
    %1810 = vmatpush1.bf16.msra.mxu0 %v1372
    %1811 = vmatprep.subr.bf16.mxu0 %v1377
    %1812 = vmatpush1.bf16.msra.mxu0 %v1376
    %1813 = vmatprep.subr.bf16.mxu0 %v1381
    %1814 = vmatpush1.bf16.msra.mxu0 %v1380
    %1815 = vmatprep.subr.bf16.mxu0 %v1385
    %1816 = vmatpush1.bf16.msra.mxu0 %v1384
    %1817 = vmatprep.subr.bf16.mxu0 %v1389
    %1818 = vmatpush1.bf16.msra.mxu0 %v1388
    %1819 = vmatprep.subr.bf16.mxu0 %v1393
    %1820 = vmatpush1.bf16.msra.mxu0 %v1392
    %1821 = vmatprep.subr.bf16.mxu0 %v1397
    %1822 = vmatpush1.bf16.msra.mxu0 %v1396
    %1823 = vmatprep.subr.bf16.mxu0 %v1401
    %1824 = vmatpush1.bf16.msra.mxu0 %v1400
    %1825 = vmatprep.subr.bf16.mxu0 %v1405
    %1826 = vmatpush1.bf16.msra.mxu0 %v1404
    %1827 = vmatprep.subr.bf16.mxu0 %v1409
    %1828 = vmatpush1.bf16.msra.mxu0 %v1408
    %1829 = vmatprep.mubr.bf16.mxu0 %v379
    %1830 = vmatmul.mubr.bf16.gmra.mrb[0].mxu0 %v378
    %v1831 = vpop.f32.mrb[0].mxu0
    %v1832 = vadd.f32 %v1789, %v1831
    %v1833 = vpop.f32.mrb[0].mxu0
    %v1834 = vadd.f32 %v1791, %v1833
    %v1835 = vpop.f32.mrb[0].mxu0
    %v1836 = vadd.f32 %v1793, %v1835
    %v1837 = vpop.f32.mrb[0].mxu0
    %v1838 = vadd.f32 %v1795, %v1837
    %1839 = vdwg.mxu0
    %1840 = vmatprep.subr.bf16.mxu0 %v1159
    %1841 = vmatpush1.bf16.msra.mxu0 %v1158
    %1842 = vmatprep.subr.bf16.mxu0 %v1163
    %1843 = vmatpush1.bf16.msra.mxu0 %v1162
    %1844 = vmatprep.subr.bf16.mxu0 %v1167
    %1845 = vmatpush1.bf16.msra.mxu0 %v1166
    %1846 = vmatprep.subr.bf16.mxu0 %v1171
    %1847 = vmatpush1.bf16.msra.mxu0 %v1170
    %1848 = vmatprep.subr.bf16.mxu0 %v1175
    %1849 = vmatpush1.bf16.msra.mxu0 %v1174
    %1850 = vmatprep.subr.bf16.mxu0 %v1179
    %1851 = vmatpush1.bf16.msra.mxu0 %v1178
    %1852 = vmatprep.subr.bf16.mxu0 %v1183
    %1853 = vmatpush1.bf16.msra.mxu0 %v1182
    %1854 = vmatprep.subr.bf16.mxu0 %v1187
    %1855 = vmatpush1.bf16.msra.mxu0 %v1186
    %1856 = vmatprep.subr.bf16.mxu0 %v1191
    %1857 = vmatpush1.bf16.msra.mxu0 %v1190
    %1858 = vmatprep.subr.bf16.mxu0 %v1195
    %1859 = vmatpush1.bf16.msra.mxu0 %v1194
    %1860 = vmatprep.subr.bf16.mxu0 %v1199
    %1861 = vmatpush1.bf16.msra.mxu0 %v1198
    %1862 = vmatprep.subr.bf16.mxu0 %v1203
    %1863 = vmatpush1.bf16.msra.mxu0 %v1202
    %1864 = vmatprep.subr.bf16.mxu0 %v1207
    %1865 = vmatpush1.bf16.msra.mxu0 %v1206
    %1866 = vmatprep.subr.bf16.mxu0 %v1211
    %1867 = vmatpush1.bf16.msra.mxu0 %v1210
    %1868 = vmatprep.subr.bf16.mxu0 %v1215
    %1869 = vmatpush1.bf16.msra.mxu0 %v1214
    %1870 = vmatprep.subr.bf16.mxu0 %v1219
    %1871 = vmatpush1.bf16.msra.mxu0 %v1218
    %1872 = vmatprep.mubr.bf16.mxu0 %v373
    %1873 = vmatmul.mubr.bf16.gmra.mrb[0].mxu0 %v372
    %v1874 = vpop.f32.mrb[0].mxu0
    %v1875 = vadd.f32 %v339, %v1874
    %v1876 = vpop.f32.mrb[0].mxu0
    %v1877 = vadd.f32 %v343, %v1876
    %v1878 = vpop.f32.mrb[0].mxu0
    %v1879 = vadd.f32 %v339, %v1878
    %v1880 = vpop.f32.mrb[0].mxu0
    %v1881 = vadd.f32 %v343, %v1880
    %1882 = vdwg.mxu0
    %1883 = vmatprep.subr.bf16.mxu0 %v1223
    %1884 = vmatpush1.bf16.msra.mxu0 %v1222
    %1885 = vmatprep.subr.bf16.mxu0 %v1227
    %1886 = vmatpush1.bf16.msra.mxu0 %v1226
    %1887 = vmatprep.subr.bf16.mxu0 %v1231
    %1888 = vmatpush1.bf16.msra.mxu0 %v1230
    %1889 = vmatprep.subr.bf16.mxu0 %v1235
    %1890 = vmatpush1.bf16.msra.mxu0 %v1234
    %1891 = vmatprep.subr.bf16.mxu0 %v1239
    %1892 = vmatpush1.bf16.msra.mxu0 %v1238
    %1893 = vmatprep.subr.bf16.mxu0 %v1243
    %1894 = vmatpush1.bf16.msra.mxu0 %v1242
    %1895 = vmatprep.subr.bf16.mxu0 %v1247
    %1896 = vmatpush1.bf16.msra.mxu0 %v1246
    %1897 = vmatprep.subr.bf16.mxu0 %v1251
    %1898 = vmatpush1.bf16.msra.mxu0 %v1250
    %1899 = vmatprep.subr.bf16.mxu0 %v1255
    %1900 = vmatpush1.bf16.msra.mxu0 %v1254
    %1901 = vmatprep.subr.bf16.mxu0 %v1259
    %1902 = vmatpush1.bf16.msra.mxu0 %v1258
    %1903 = vmatprep.subr.bf16.mxu0 %v1263
    %1904 = vmatpush1.bf16.msra.mxu0 %v1262
    %1905 = vmatprep.subr.bf16.mxu0 %v1267
    %1906 = vmatpush1.bf16.msra.mxu0 %v1266
    %1907 = vmatprep.subr.bf16.mxu0 %v1271
    %1908 = vmatpush1.bf16.msra.mxu0 %v1270
    %1909 = vmatprep.subr.bf16.mxu0 %v1275
    %1910 = vmatpush1.bf16.msra.mxu0 %v1274
    %1911 = vmatprep.subr.bf16.mxu0 %v1279
    %1912 = vmatpush1.bf16.msra.mxu0 %v1278
    %1913 = vmatprep.subr.bf16.mxu0 %v1283
    %1914 = vmatpush1.bf16.msra.mxu0 %v1282
    %1915 = vmatprep.mubr.bf16.mxu0 %v375
    %1916 = vmatmul.mubr.bf16.gmra.mrb[0].mxu0 %v374
    %v1917 = vpop.f32.mrb[0].mxu0
    %v1918 = vadd.f32 %v1875, %v1917
    %v1919 = vpop.f32.mrb[0].mxu0
    %v1920 = vadd.f32 %v1877, %v1919
    %v1921 = vpop.f32.mrb[0].mxu0
    %v1922 = vadd.f32 %v1879, %v1921
    %v1923 = vpop.f32.mrb[0].mxu0
    %v1924 = vadd.f32 %v1881, %v1923
    %1925 = vdwg.mxu0
    %1926 = vmatprep.subr.bf16.mxu0 %v1287
    %1927 = vmatpush1.bf16.msra.mxu0 %v1286
    %1928 = vmatprep.subr.bf16.mxu0 %v1291
    %1929 = vmatpush1.bf16.msra.mxu0 %v1290
    %1930 = vmatprep.subr.bf16.mxu0 %v1295
    %1931 = vmatpush1.bf16.msra.mxu0 %v1294
    %1932 = vmatprep.subr.bf16.mxu0 %v1299
    %1933 = vmatpush1.bf16.msra.mxu0 %v1298
    %1934 = vmatprep.subr.bf16.mxu0 %v1303
    %1935 = vmatpush1.bf16.msra.mxu0 %v1302
    %1936 = vmatprep.subr.bf16.mxu0 %v1307
    %1937 = vmatpush1.bf16.msra.mxu0 %v1306
    %1938 = vmatprep.subr.bf16.mxu0 %v1311
    %1939 = vmatpush1.bf16.msra.mxu0 %v1310
    %1940 = vmatprep.subr.bf16.mxu0 %v1315
    %1941 = vmatpush1.bf16.msra.mxu0 %v1314
    %1942 = vmatprep.subr.bf16.mxu0 %v1319
    %1943 = vmatpush1.bf16.msra.mxu0 %v1318
    %1944 = vmatprep.subr.bf16.mxu0 %v1323
    %1945 = vmatpush1.bf16.msra.mxu0 %v1322
    %1946 = vmatprep.subr.bf16.mxu0 %v1327
    %1947 = vmatpush1.bf16.msra.mxu0 %v1326
    %1948 = vmatprep.subr.bf16.mxu0 %v1331
    %1949 = vmatpush1.bf16.msra.mxu0 %v1330
    %1950 = vmatprep.subr.bf16.mxu0 %v1335
    %1951 = vmatpush1.bf16.msra.mxu0 %v1334
    %1952 = vmatprep.subr.bf16.mxu0 %v1339
    %1953 = vmatpush1.bf16.msra.mxu0 %v1338
    %1954 = vmatprep.subr.bf16.mxu0 %v1343
    %1955 = vmatpush1.bf16.msra.mxu0 %v1342
    %1956 = vmatprep.subr.bf16.mxu0 %v1347
    %1957 = vmatpush1.bf16.msra.mxu0 %v1346
    %1958 = vmatprep.mubr.bf16.mxu0 %v377
    %1959 = vmatmul.mubr.bf16.gmra.mrb[0].mxu0 %v376
    %v1960 = vpop.f32.mrb[0].mxu0
    %v1961 = vadd.f32 %v1918, %v1960
    %v1962 = vpop.f32.mrb[0].mxu0
    %v1963 = vadd.f32 %v1920, %v1962
    %v1964 = vpop.f32.mrb[0].mxu0
    %v1965 = vadd.f32 %v1922, %v1964
    %v1966 = vpop.f32.mrb[0].mxu0
    %v1967 = vadd.f32 %v1924, %v1966
    %1968 = vdwg.mxu0
    %1969 = vmatprep.subr.bf16.mxu0 %v1351
    %1970 = vmatpush1.bf16.msra.mxu0 %v1350
    %1971 = vmatprep.subr.bf16.mxu0 %v1355
    %1972 = vmatpush1.bf16.msra.mxu0 %v1354
    %1973 = vmatprep.subr.bf16.mxu0 %v1359
    %1974 = vmatpush1.bf16.msra.mxu0 %v1358
    %1975 = vmatprep.subr.bf16.mxu0 %v1363
    %1976 = vmatpush1.bf16.msra.mxu0 %v1362
    %1977 = vmatprep.subr.bf16.mxu0 %v1367
    %1978 = vmatpush1.bf16.msra.mxu0 %v1366
    %1979 = vmatprep.subr.bf16.mxu0 %v1371
    %1980 = vmatpush1.bf16.msra.mxu0 %v1370
    %1981 = vmatprep.subr.bf16.mxu0 %v1375
    %1982 = vmatpush1.bf16.msra.mxu0 %v1374
    %1983 = vmatprep.subr.bf16.mxu0 %v1379
    %1984 = vmatpush1.bf16.msra.mxu0 %v1378
    %1985 = vmatprep.subr.bf16.mxu0 %v1383
    %1986 = vmatpush1.bf16.msra.mxu0 %v1382
    %1987 = vmatprep.subr.bf16.mxu0 %v1387
    %1988 = vmatpush1.bf16.msra.mxu0 %v1386
    %1989 = vmatprep.subr.bf16.mxu0 %v1391
    %1990 = vmatpush1.bf16.msra.mxu0 %v1390
    %1991 = vmatprep.subr.bf16.mxu0 %v1395
    %1992 = vmatpush1.bf16.msra.mxu0 %v1394
    %1993 = vmatprep.subr.bf16.mxu0 %v1399
    %1994 = vmatpush1.bf16.msra.mxu0 %v1398
    %1995 = vmatprep.subr.bf16.mxu0 %v1403
    %1996 = vmatpush1.bf16.msra.mxu0 %v1402
    %1997 = vmatprep.subr.bf16.mxu0 %v1407
    %1998 = vmatpush1.bf16.msra.mxu0 %v1406
    %1999 = vmatprep.subr.bf16.mxu0 %v1411
    %2000 = vmatpush1.bf16.msra.mxu0 %v1410
    %2001 = vmatprep.mubr.bf16.mxu0 %v379
    %2002 = vmatmul.mubr.bf16.gmra.mrb[0].mxu0 %v378
    %v2003 = vpop.f32.mrb[0].mxu0
    %v2004 = vadd.f32 %v1961, %v2003
    %v2005 = vpop.f32.mrb[0].mxu0
    %v2006 = vadd.f32 %v1963, %v2005
    %v2007 = vpop.f32.mrb[0].mxu0
    %v2008 = vadd.f32 %v1965, %v2007
    %v2009 = vpop.f32.mrb[0].mxu0
    %v2010 = vadd.f32 %v1967, %v2009
    %2011 = vdwg.mxu0
    %v2012 = vmax.f32 %v1832, 0.0
    %v2013 = vmax.f32 %v1834, 0.0
    %v2014 = vmax.f32 %v2004, 0.0
    %v2015 = vmax.f32 %v2006, 0.0
    %v2016 = vmax.f32 %v1836, 0.0
    %v2017 = vmax.f32 %v1838, 0.0
    %v2018 = vmax.f32 %v2008, 0.0
    %v2019 = vmax.f32 %v2010, 0.0
    %v2020 = vld [vmem:[#allocation7] sm:$0xff]
    %v2021 = vld [vmem:[#allocation7 + $0x8] sm:$0xff]
    %v2022 = vld [vmem:[#allocation7 + $0x10] sm:$0xff]
    %v2023 = vld [vmem:[#allocation7 + $0x18] sm:$0xff]
    %v2024 = vld [vmem:[#allocation7 + $0x20] sm:$0xff]
    %v2025 = vld [vmem:[#allocation7 + $0x28] sm:$0xff]
    %v2026 = vld [vmem:[#allocation7 + $0x30] sm:$0xff]
    %v2027 = vld [vmem:[#allocation7 + $0x38] sm:$0xff]
    %v2028 = vld [vmem:[#allocation7 + $0x40] sm:$0xff]
    %v2029 = vld [vmem:[#allocation7 + $0x48] sm:$0xff]
    %v2030 = vld [vmem:[#allocation7 + $0x50] sm:$0xff]
    %v2031 = vld [vmem:[#allocation7 + $0x58] sm:$0xff]
    %v2032 = vld [vmem:[#allocation7 + $0x60] sm:$0xff]
    %v2033 = vld [vmem:[#allocation7 + $0x68] sm:$0xff]
    %v2034 = vld [vmem:[#allocation7 + $0x70] sm:$0xff]
    %v2035 = vld [vmem:[#allocation7 + $0x78] sm:$0xff]
    %v2036 = vld [vmem:[#allocation7 + $0x80] sm:$0xff]
    %v2037 = vld [vmem:[#allocation7 + $0x88] sm:$0xff]
    %v2038 = vld [vmem:[#allocation7 + $0x90] sm:$0xff]
    %v2039 = vld [vmem:[#allocation7 + $0x98] sm:$0xff]
    %v2040 = vld [vmem:[#allocation7 + $0xa0] sm:$0xff]
    %v2041 = vld [vmem:[#allocation7 + $0xa8] sm:$0xff]
    %v2042 = vld [vmem:[#allocation7 + $0xb0] sm:$0xff]
    %v2043 = vld [vmem:[#allocation7 + $0xb8] sm:$0xff]
    %v2044 = vld [vmem:[#allocation7 + $0xc0] sm:$0xff]
    %v2045 = vld [vmem:[#allocation7 + $0xc8] sm:$0xff]
    %v2046 = vld [vmem:[#allocation7 + $0xd0] sm:$0xff]
    %v2047 = vld [vmem:[#allocation7 + $0xd8] sm:$0xff]
    %v2048 = vld [vmem:[#allocation7 + $0xe0] sm:$0xff]
    %v2049 = vld [vmem:[#allocation7 + $0xe8] sm:$0xff]
    %v2050 = vld [vmem:[#allocation7 + $0xf0] sm:$0xff]
    %v2051 = vld [vmem:[#allocation7 + $0xf8] sm:$0xff]
    %v2052 = vld [vmem:[#allocation7 + $0x100] sm:$0xff]
    %v2053 = vld [vmem:[#allocation7 + $0x108] sm:$0xff]
    %v2054 = vld [vmem:[#allocation7 + $0x110] sm:$0xff]
    %v2055 = vld [vmem:[#allocation7 + $0x118] sm:$0xff]
    %v2056 = vld [vmem:[#allocation7 + $0x120] sm:$0xff]
    %v2057 = vld [vmem:[#allocation7 + $0x128] sm:$0xff]
    %v2058 = vld [vmem:[#allocation7 + $0x130] sm:$0xff]
    %v2059 = vld [vmem:[#allocation7 + $0x138] sm:$0xff]
    %v2060 = vld [vmem:[#allocation7 + $0x140] sm:$0xff]
    %v2061 = vld [vmem:[#allocation7 + $0x148] sm:$0xff]
    %v2062 = vld [vmem:[#allocation7 + $0x150] sm:$0xff]
    %v2063 = vld [vmem:[#allocation7 + $0x158] sm:$0xff]
    %v2064 = vld [vmem:[#allocation7 + $0x160] sm:$0xff]
    %v2065 = vld [vmem:[#allocation7 + $0x168] sm:$0xff]
    %v2066 = vld [vmem:[#allocation7 + $0x170] sm:$0xff]
    %v2067 = vld [vmem:[#allocation7 + $0x178] sm:$0xff]
    %v2068 = vld [vmem:[#allocation7 + $0x180] sm:$0xff]
    %v2069 = vld [vmem:[#allocation7 + $0x188] sm:$0xff]
    %v2070 = vld [vmem:[#allocation7 + $0x190] sm:$0xff]
    %v2071 = vld [vmem:[#allocation7 + $0x198] sm:$0xff]
    %v2072 = vld [vmem:[#allocation7 + $0x1a0] sm:$0xff]
    %v2073 = vld [vmem:[#allocation7 + $0x1a8] sm:$0xff]
    %v2074 = vld [vmem:[#allocation7 + $0x1b0] sm:$0xff]
    %v2075 = vld [vmem:[#allocation7 + $0x1b8] sm:$0xff]
    %v2076 = vld [vmem:[#allocation7 + $0x1c0] sm:$0xff]
    %v2077 = vld [vmem:[#allocation7 + $0x1c8] sm:$0xff]
    %v2078 = vld [vmem:[#allocation7 + $0x1d0] sm:$0xff]
    %v2079 = vld [vmem:[#allocation7 + $0x1d8] sm:$0xff]
    %v2080 = vld [vmem:[#allocation7 + $0x1e0] sm:$0xff]
    %v2081 = vld [vmem:[#allocation7 + $0x1e8] sm:$0xff]
    %v2082 = vld [vmem:[#allocation7 + $0x1f0] sm:$0xff]
    %v2083 = vld [vmem:[#allocation7 + $0x1f8] sm:$0xff]
    %v2084 = vld [vmem:[%s4] sm:$0x1]
    %v2086 = vlaneseq
    %v2087 = vshrl.u32 %v2086, 7
    %v2088 = vsub.s32 0, %v2087
    %v2089 = vrot.slane %v2084, %v2088
    %2091 = vmatprep.subr.mxu0 0.0
    %2092 = vmatpush1.msra.mxu0 %v2020
    %2093 = vmatprep.subr.mxu0 0.0
    %2094 = vmatpush1.msra.mxu0 %v2021
    %2095 = vmatprep.subr.mxu0 0.0
    %2096 = vmatpush1.msra.mxu0 %v2022
    %2097 = vmatprep.subr.mxu0 0.0
    %2098 = vmatpush1.msra.mxu0 %v2023
    %2099 = vmatprep.subr.mxu0 0.0
    %2100 = vmatpush1.msra.mxu0 %v2024
    %2101 = vmatprep.subr.mxu0 0.0
    %2102 = vmatpush1.msra.mxu0 %v2025
    %2103 = vmatprep.subr.mxu0 0.0
    %2104 = vmatpush1.msra.mxu0 %v2026
    %2105 = vmatprep.subr.mxu0 0.0
    %2106 = vmatpush1.msra.mxu0 %v2027
    %2107 = vmatprep.subr.mxu0 0.0
    %2108 = vmatpush1.msra.mxu0 %v2028
    %2109 = vmatprep.subr.mxu0 0.0
    %2110 = vmatpush1.msra.mxu0 %v2029
    %2111 = vmatprep.subr.mxu0 0.0
    %2112 = vmatpush1.msra.mxu0 %v2030
    %2113 = vmatprep.subr.mxu0 0.0
    %2114 = vmatpush1.msra.mxu0 %v2031
    %2115 = vmatprep.subr.mxu0 0.0
    %2116 = vmatpush1.msra.mxu0 %v2032
    %2117 = vmatprep.subr.mxu0 0.0
    %2118 = vmatpush1.msra.mxu0 %v2033
    %2119 = vmatprep.subr.mxu0 0.0
    %2120 = vmatpush1.msra.mxu0 %v2034
    %2121 = vmatprep.subr.mxu0 0.0
    %2122 = vmatpush1.msra.mxu0 %v2035
    %2123 = vmatprep.subr.mxu0 0.0
    %2124 = vmatpush1.msra.mxu0 %v2036
    %2125 = vmatprep.subr.mxu0 0.0
    %2126 = vmatpush1.msra.mxu0 %v2037
    %2127 = vmatprep.subr.mxu0 0.0
    %2128 = vmatpush1.msra.mxu0 %v2038
    %2129 = vmatprep.subr.mxu0 0.0
    %2130 = vmatpush1.msra.mxu0 %v2039
    %2131 = vmatprep.subr.mxu0 0.0
    %2132 = vmatpush1.msra.mxu0 %v2040
    %2133 = vmatprep.subr.mxu0 0.0
    %2134 = vmatpush1.msra.mxu0 %v2041
    %2135 = vmatprep.subr.mxu0 0.0
    %2136 = vmatpush1.msra.mxu0 %v2042
    %2137 = vmatprep.subr.mxu0 0.0
    %2138 = vmatpush1.msra.mxu0 %v2043
    %2139 = vmatprep.subr.mxu0 0.0
    %2140 = vmatpush1.msra.mxu0 %v2044
    %2141 = vmatprep.subr.mxu0 0.0
    %2142 = vmatpush1.msra.mxu0 %v2045
    %2143 = vmatprep.subr.mxu0 0.0
    %2144 = vmatpush1.msra.mxu0 %v2046
    %2145 = vmatprep.subr.mxu0 0.0
    %2146 = vmatpush1.msra.mxu0 %v2047
    %2147 = vmatprep.subr.mxu0 0.0
    %2148 = vmatpush1.msra.mxu0 %v2048
    %2149 = vmatprep.subr.mxu0 0.0
    %2150 = vmatpush1.msra.mxu0 %v2049
    %2151 = vmatprep.subr.mxu0 0.0
    %2152 = vmatpush1.msra.mxu0 %v2050
    %2153 = vmatprep.subr.mxu0 0.0
    %2154 = vmatpush1.msra.mxu0 %v2051
    %2155 = vmatprep.mubr.f32.mxu0 %v2013
    %2156 = vmatmul.mubr.f32.gmra.mrb[0].mxu0 %v2012
    %v2157 = vpop.f32.mrb[0].mxu0
    %v2158 = vadd.f32 %v2089, %v2157
    %v2159 = vpop.f32.mrb[0].mxu0
    %2160 = vmatprep.mubr.f32.mxu0 %v2017
    %2161 = vmatmul.mubr.f32.gmra.mrb[0].mxu0 %v2016
    %v2162 = vpop.f32.mrb[0].mxu0
    %v2163 = vadd.f32 %v2089, %v2162
    %v2164 = vpop.f32.mrb[0].mxu0
    %2165 = vdwg.mxu0
    %2166 = vmatprep.subr.mxu0 0.0
    %2167 = vmatpush1.msra.mxu0 %v2052
    %2168 = vmatprep.subr.mxu0 0.0
    %2169 = vmatpush1.msra.mxu0 %v2053
    %2170 = vmatprep.subr.mxu0 0.0
    %2171 = vmatpush1.msra.mxu0 %v2054
    %2172 = vmatprep.subr.mxu0 0.0
    %2173 = vmatpush1.msra.mxu0 %v2055
    %2174 = vmatprep.subr.mxu0 0.0
    %2175 = vmatpush1.msra.mxu0 %v2056
    %2176 = vmatprep.subr.mxu0 0.0
    %2177 = vmatpush1.msra.mxu0 %v2057
    %2178 = vmatprep.subr.mxu0 0.0
    %2179 = vmatpush1.msra.mxu0 %v2058
    %2180 = vmatprep.subr.mxu0 0.0
    %2181 = vmatpush1.msra.mxu0 %v2059
    %2182 = vmatprep.subr.mxu0 0.0
    %2183 = vmatpush1.msra.mxu0 %v2060
    %2184 = vmatprep.subr.mxu0 0.0
    %2185 = vmatpush1.msra.mxu0 %v2061
    %2186 = vmatprep.subr.mxu0 0.0
    %2187 = vmatpush1.msra.mxu0 %v2062
    %2188 = vmatprep.subr.mxu0 0.0
    %2189 = vmatpush1.msra.mxu0 %v2063
    %2190 = vmatprep.subr.mxu0 0.0
    %2191 = vmatpush1.msra.mxu0 %v2064
    %2192 = vmatprep.subr.mxu0 0.0
    %2193 = vmatpush1.msra.mxu0 %v2065
    %2194 = vmatprep.subr.mxu0 0.0
    %2195 = vmatpush1.msra.mxu0 %v2066
    %2196 = vmatprep.subr.mxu0 0.0
    %2197 = vmatpush1.msra.mxu0 %v2067
    %2198 = vmatprep.subr.mxu0 0.0
    %2199 = vmatpush1.msra.mxu0 %v2068
    %2200 = vmatprep.subr.mxu0 0.0
    %2201 = vmatpush1.msra.mxu0 %v2069
    %2202 = vmatprep.subr.mxu0 0.0
    %2203 = vmatpush1.msra.mxu0 %v2070
    %2204 = vmatprep.subr.mxu0 0.0
    %2205 = vmatpush1.msra.mxu0 %v2071
    %2206 = vmatprep.subr.mxu0 0.0
    %2207 = vmatpush1.msra.mxu0 %v2072
    %2208 = vmatprep.subr.mxu0 0.0
    %2209 = vmatpush1.msra.mxu0 %v2073
    %2210 = vmatprep.subr.mxu0 0.0
    %2211 = vmatpush1.msra.mxu0 %v2074
    %2212 = vmatprep.subr.mxu0 0.0
    %2213 = vmatpush1.msra.mxu0 %v2075
    %2214 = vmatprep.subr.mxu0 0.0
    %2215 = vmatpush1.msra.mxu0 %v2076
    %2216 = vmatprep.subr.mxu0 0.0
    %2217 = vmatpush1.msra.mxu0 %v2077
    %2218 = vmatprep.subr.mxu0 0.0
    %2219 = vmatpush1.msra.mxu0 %v2078
    %2220 = vmatprep.subr.mxu0 0.0
    %2221 = vmatpush1.msra.mxu0 %v2079
    %2222 = vmatprep.subr.mxu0 0.0
    %2223 = vmatpush1.msra.mxu0 %v2080
    %2224 = vmatprep.subr.mxu0 0.0
    %2225 = vmatpush1.msra.mxu0 %v2081
    %2226 = vmatprep.subr.mxu0 0.0
    %2227 = vmatpush1.msra.mxu0 %v2082
    %2228 = vmatprep.subr.mxu0 0.0
    %2229 = vmatpush1.msra.mxu0 %v2083
    %2230 = vmatprep.mubr.f32.mxu0 %v2015
    %2231 = vmatmul.mubr.f32.gmra.mrb[0].mxu0 %v2014
    %v2232 = vpop.f32.mrb[0].mxu0
    %v2233 = vadd.f32 %v2158, %v2232
    %v2234 = vpop.f32.mrb[0].mxu0
    %2235 = vmatprep.mubr.f32.mxu0 %v2019
    %2236 = vmatmul.mubr.f32.gmra.mrb[0].mxu0 %v2018
    %v2237 = vpop.f32.mrb[0].mxu0
    %v2238 = vadd.f32 %v2163, %v2237
    %v2239 = vpop.f32.mrb[0].mxu0
    %2240 = vdwg.mxu0
    %2241 = vst [vmem:[#allocation8] sm:$0xff] %v2233
    %2242 = vst [vmem:[#allocation8 + $0x8] sm:$0xff] %v2238
    // Predicated region
    $region34: #{tpu_custom_call.1} parent=1 // pred_check
      _
    $region35: #{tpu_custom_call.1} parent=1 // pred_check_branch
      %2244 = sbr.rel (0) target = $region37
    $region36: #{tpu_custom_call.1} parent=1 // pred_region
      %s2246 = ssub.s32 256, 256
      %2247 = vsyncadd [#allocation4], %s2246
      %s2248 = sshll.u32 [#allocation8], 4
      %s2249 = int_to_ptr.vmem [resolvable:$true] %s2248
      %2254 = dma.vmem_to_hbm [thread:$0]  %s2249, 256, %s5, [#allocation4], 128, 128, 8
    $region37: #{tpu_custom_call.1} parent=1 // pred_fallthru
      _
    // Predicated region
    $region38: #{tpu_custom_call.1} parent=1 // pred_check
      _
    $region39: #{tpu_custom_call.1} parent=1 // pred_check_branch
      %2256 = sbr.rel (0) target = $region41
    $region40: #{tpu_custom_call.1} parent=1 // pred_region
      %2257 = dma.done [#allocation4], 256
    $region41: #{tpu_custom_call.1} parent=1 // pred_fallthru
      _
    %2258 = vsyncpa [#allocation3], 1
    %2259 = vsyncpa [#allocation6], 1
    %2260 = vsyncpa [#allocation4], 1

</llo_original>
